<compile_context>
chip_gen: v6e
topology: v6e:2x2x1
jax: 0.10.0
libtpu: 0.0.40
codegen_flags: <defaults>
</compile_context>

<pallas_src>
import jax
import jax.numpy as jnp
import numpy as np
from jax import lax
from jax.experimental import pallas as pl
from jax.experimental.pallas import tpu as pltpu


def _round_up(x, m):
    return ((x + m - 1) // m) * m


def _lstm_kernel(active_ref,                      # SMEM (nb, nt) int32 (scalar prefetch)
                 len_ref, x_ref, wih_ref, whh_ref, bias_ref,
                 out_ref, cfin_ref,
                 h_scr, c_scr, xg_scr):
    TT, BB, D = x_ref.shape                       # time tile, batch block, input dim
    Hp = h_scr.shape[1]                           # padded hidden (multiple of 128)

    b = pl.program_id(0)                          # batch block   ("parallel")
    t = pl.program_id(1)                          # time chunk    ("arbitrary")
    nt = pl.num_programs(1)

    # new batch block -> zero initial state
    @pl.when(t == 0)
    def _init():
        h_scr[...] = jnp.zeros_like(h_scr)
        c_scr[...] = jnp.zeros_like(c_scr)

    chunk_active = active_ref[b, t] > 0

    # every sequence in this batch block has already ended: pure padding.
    @pl.when(jnp.logical_not(chunk_active))
    def _padded_chunk():
        out_ref[...] = jnp.zeros_like(out_ref)

    @pl.when(chunk_active)
    def _compute():
        # ---- hoisted input projection: ONE MXU matmul for the whole chunk ----
        x2 = x_ref[...].reshape(TT * BB, D)                    # bf16 already
        xg_scr[...] = (
            jnp.dot(x2, wih_ref[...], preferred_element_type=jnp.float32)
            + bias_ref[...])                                   # (TT*BB, 4Hp) f32

        whh = whh_ref[...]                                     # (Hp, 4Hp) bf16
        # steps still valid inside this chunk, per batch row (loaded once)
        steps_left = len_ref[...] - t * TT                     # (BB, 1) int32

        # ---- sequential recurrence over the time tile ----
        def step(i, carry):
            h_prev = h_scr[...]                                # (BB, Hp) f32
            c_prev = c_scr[...]
            row = pl.multiple_of(i * BB, BB)
            gates = (xg_scr[pl.ds(row, BB), :]
                     + jnp.dot(h_prev.astype(jnp.bfloat16), whh,
                               preferred_element_type=jnp.float32))   # (BB, 4Hp)

            # PyTorch gate order: i, f, g, o (lane-aligned slices of width Hp)
            ig = jax.nn.sigmoid(gates[:, 0 * Hp:1 * Hp])
            fg = jax.nn.sigmoid(gates[:, 1 * Hp:2 * Hp])
            gg = jnp.tanh(gates[:, 2 * Hp:3 * Hp])
            og = jax.nn.sigmoid(gates[:, 3 * Hp:4 * Hp])

            c_new = fg * c_prev + ig * gg
            h_new = og * jnp.tanh(c_new)

            # freeze state past each sequence's length; zero padded outputs
            keep = jnp.broadcast_to(
                (steps_left > i).astype(jnp.float32), (BB, Hp))
            drop = 1.0 - keep
            c_scr[...] = keep * c_new + drop * c_prev
            h_scr[...] = keep * h_new + drop * h_prev
            out_ref[i] = (keep * h_new).astype(out_ref.dtype)
            return carry

        lax.fori_loop(0, TT, step, 0, unroll=min(TT, 8))

    # final cell state (frozen at each sequence's last valid step)
    @pl.when(t == nt - 1)
    def _final():
        cfin_ref[0] = c_scr[...].astype(cfin_ref.dtype)


def audio_subnet_forward(sequence, lengths, w_ih, w_hh, b_ih, b_hh,
                         *, time_tile=64, batch_tile=8):
    """sequence: (B, T, D) batch-first; lengths: host int array (B,).
    Returns (padded_h (T_max, B, H) time-major, final_c (1, B, H))."""
    B, T, D = sequence.shape
    H = w_hh.shape[1]

    Hp = _round_up(H, 128)            # lane-dense hidden width
    BB = batch_tile                   # sublane-aligned batch block
    Bp = _round_up(B, BB)
    nb = Bp // BB
    TT = max(1, min(time_tile, T))    # time tile (bounds VMEM, enables pipelining)
    T_pad = _round_up(T, TT)
    nt = T_pad // TT

    # ---- repack weights: torch (4H, X) -> (X, 4*Hp), each gate at a 128-lane
    # boundary; padded rows/cols are zero (padded hidden units stay exactly 0).
    wih_p = jnp.zeros((D, 4 * Hp), jnp.float32)
    whh_p = jnp.zeros((Hp, 4 * Hp), jnp.float32)
    bias_p = jnp.zeros((1, 4 * Hp), jnp.float32)
    for g in range(4):
        wih_p = wih_p.at[:, g * Hp:g * Hp + H].set(
            jnp.transpose(w_ih[g * H:(g + 1) * H, :]).astype(jnp.float32))
        whh_p = whh_p.at[:H, g * Hp:g * Hp + H].set(
            jnp.transpose(w_hh[g * H:(g + 1) * H, :]).astype(jnp.float32))
        bias_p = bias_p.at[0, g * Hp:g * Hp + H].set(
            (b_ih[g * H:(g + 1) * H] + b_hh[g * H:(g + 1) * H]).astype(jnp.float32))
    wih_p = wih_p.astype(jnp.bfloat16)
    whh_p = whh_p.astype(jnp.bfloat16)

    # ---- time-major, padded input; stored bf16 in HBM (halves input DMA)
    x_tm = jnp.transpose(sequence, (1, 0, 2)).astype(jnp.bfloat16)    # (T, B, D)
    x_pad = jnp.zeros((T_pad, Bp, D), jnp.bfloat16).at[:T, :B, :].set(x_tm)

    lens_np = np.zeros((Bp,), np.int64)
    lens_np[:B] = np.asarray(lengths).astype(np.int64)
    lens_pad = jnp.asarray(lens_np.reshape(Bp, 1), jnp.int32)

    # per-(batch block, time chunk) "any sequence still running" flags -> SMEM
    blk_max = lens_np.reshape(nb, BB).max(axis=1)
    chunk_start = np.arange(nt, dtype=np.int64) * TT
    active = jnp.asarray(
        (blk_max[:, None] > chunk_start[None, :]).astype(np.int32))   # (nb, nt)

    grid_spec = pltpu.PrefetchScalarGridSpec(
        num_scalar_prefetch=1,
        grid=(nb, nt),
        in_specs=[
            pl.BlockSpec((BB, 1), lambda b, t, act: (b, 0)),           # lengths
            pl.BlockSpec((TT, BB, D), lambda b, t, act: (t, b, 0)),    # x (pipelined)
            pl.BlockSpec((D, 4 * Hp), lambda b, t, act: (0, 0)),       # W_ih^T
            pl.BlockSpec((Hp, 4 * Hp), lambda b, t, act: (0, 0)),      # W_hh^T
            pl.BlockSpec((1, 4 * Hp), lambda b, t, act: (0, 0)),       # bias
        ],
        out_specs=[
            pl.BlockSpec((TT, BB, Hp), lambda b, t, act: (t, b, 0)),   # padded h
            pl.BlockSpec((1, BB, Hp), lambda b, t, act: (0, b, 0)),    # final c
        ],
        scratch_shapes=[
            pltpu.VMEM((BB, Hp), jnp.float32),            # h state (persistent)
            pltpu.VMEM((BB, Hp), jnp.float32),            # c state (persistent)
            pltpu.VMEM((TT * BB, 4 * Hp), jnp.float32),   # hoisted x-projection
        ],
    )

    out_full, cfin_full = pl.pallas_call(
        _lstm_kernel,
        out_shape=(jax.ShapeDtypeStruct((T_pad, Bp, Hp), jnp.float32),
                   jax.ShapeDtypeStruct((1, Bp, Hp), jnp.float32)),
        grid_spec=grid_spec,
        compiler_params=pltpu.CompilerParams(
            dimension_semantics=("parallel", "arbitrary"),
            vmem_limit_bytes=32 * 1024 * 1024),
    )(active, lens_pad, x_pad, wih_p, whh_p, bias_p)

    # pad_packed_sequence trims the time axis to max(length); drop padding.
    t_out = int(lens_np.max())
    padded_h = out_full[:t_out, :B, :H]
    final_c = cfin_full[:, :B, :H]
    return padded_h, final_c


def _ref_forward(sequence, lengths, w_ih, w_hh, b_ih, b_hh):
    """NumPy reference with the same bf16-input / f32-accumulate matmul scheme
    as the kernel (state kept in f32), replicating packed-LSTM semantics."""
    def bf16(a):
        return np.asarray(jnp.asarray(np.asarray(a), jnp.bfloat16), np.float32)

    B, T, D = sequence.shape
    H = w_hh.shape[1]
    wih = bf16(w_ih)
    whh = bf16(w_hh)
    seq = bf16(sequence)
    bias = np.asarray(b_ih, np.float32) + np.asarray(b_hh, np.float32)
    h = np.zeros((B, H), np.float32)
    c = np.zeros((B, H), np.float32)
    outs = np.zeros((T, B, H), np.float32)
    lengths = np.asarray(lengths)
    for t in range(T):
        gates = seq[:, t] @ wih.T + bf16(h) @ whh.T + bias
        i = 1.0 / (1.0 + np.exp(-gates[:, 0 * H:1 * H]))
        f = 1.0 / (1.0 + np.exp(-gates[:, 1 * H:2 * H]))
        g = np.tanh(gates[:, 2 * H:3 * H])
        o = 1.0 / (1.0 + np.exp(-gates[:, 3 * H:4 * H]))
        c_new = f * c + i * g
        h_new = o * np.tanh(c_new)
        mask = (lengths > t)[:, None]
        c = np.where(mask, c_new, c)
        h = np.where(mask, h_new, h)
        outs[t] = np.where(mask, h_new, 0.0)
    t_out = int(np.max(lengths))
    return outs[:t_out], c[None]


if __name__ == "__main__":
    # small shapes: batch=2, seq=8, orig_d_a=16, audio_hidden=32
    B, T, D, H = 2, 8, 16, 32
    key = jax.random.PRNGKey(0)
    k1, k2, k3, k4, k5 = jax.random.split(key, 5)
    bound = 1.0 / np.sqrt(H)                      # PyTorch LSTM init range
    w_ih = jax.random.uniform(k1, (4 * H, D), jnp.float32, -bound, bound)
    w_hh = jax.random.uniform(k2, (4 * H, H), jnp.float32, -bound, bound)
    b_ih = jax.random.uniform(k3, (4 * H,), jnp.float32, -bound, bound)
    b_hh = jax.random.uniform(k4, (4 * H,), jnp.float32, -bound, bound)
    sequence = jax.random.normal(k5, (B, T, D), jnp.float32)
    lengths = np.array([8, 5], np.int64)          # max(length) == T

    padded_h, final_c = audio_subnet_forward(sequence, lengths,
                                             w_ih, w_hh, b_ih, b_hh)
    padded_h = jax.block_until_ready(padded_h)
    final_c = jax.block_until_ready(final_c)

    ref_h, ref_c = _ref_forward(np.asarray(sequence), lengths,
                                np.asarray(w_ih), np.asarray(w_hh),
                                np.asarray(b_ih), np.asarray(b_hh))
    assert padded_h.shape == ref_h.shape and final_c.shape == ref_c.shape
    # bf16 matmul inputs / f32 accumulation -> small numerical difference vs
    # the (bf16-emulating) numpy reference; tolerance reflects that.
    assert np.allclose(np.asarray(padded_h), ref_h, atol=5e-3, rtol=5e-3)
    assert np.allclose(np.asarray(final_c), ref_c, atol=5e-3, rtol=5e-3)
    print("KERNEL_OK")
</pallas_src>

<mosaic_0001>
module attributes {stable_mosaic.version = 11 : i64} {
  func.func @_lstm_kernel(%arg0: i32, %arg1: i32, %arg2: memref<1x1xi32, #tpu.memory_space<smem>>, %arg3: memref<8x1xi32, #tpu.memory_space<vmem>>, %arg4: memref<8x8x16xbf16, #tpu.memory_space<vmem>>, %arg5: memref<16x512xbf16, #tpu.memory_space<vmem>>, %arg6: memref<128x512xbf16, #tpu.memory_space<vmem>>, %arg7: memref<1x512xf32, #tpu.memory_space<vmem>>, %arg8: memref<8x8x128xf32, #tpu.memory_space<vmem>>, %arg9: memref<1x8x128xf32, #tpu.memory_space<vmem>>, %arg10: memref<8x128xf32, #tpu.memory_space<vmem>>, %arg11: memref<8x128xf32, #tpu.memory_space<vmem>>, %arg12: memref<64x512xf32, #tpu.memory_space<vmem>>) attributes {dimension_semantics = [#tpu.dimension_semantics<parallel>, #tpu.dimension_semantics<arbitrary>], iteration_bounds = array<i64: 1, 1>, scalar_prefetch = 1 : i64, scratch_operands = 3 : i64, tpu.core_type = #tpu.core_type<tc>, window_params = [{transform_indices = @transform_0, window_bounds = array<i64: 8, 1>}, {transform_indices = @transform_1, window_bounds = array<i64: 8, 8, 16>}, {pipeline_mode = #tpu.pipeline_mode<synchronous>, transform_indices = @transform_2, window_bounds = array<i64: 16, 512>}, {pipeline_mode = #tpu.pipeline_mode<synchronous>, transform_indices = @transform_3, window_bounds = array<i64: 128, 512>}, {pipeline_mode = #tpu.pipeline_mode<synchronous>, transform_indices = @transform_4, window_bounds = array<i64: 1, 512>}, {transform_indices = @transform_5, window_bounds = array<i64: 8, 8, 128>}, {transform_indices = @transform_6, window_bounds = array<i64: 1, 8, 128>}]} {
    %c0_i32 = arith.constant 0 : i32
    %0 = arith.cmpi eq, %arg1, %c0_i32 : i32
    %1 = arith.extui %0 : i1 to i32
    %c0_i32_0 = arith.constant 0 : i32
    %2 = arith.cmpi ne, %1, %c0_i32_0 : i32
    scf.if %2 {
      %cst = arith.constant 0.000000e+00 : f32
      %15 = vector.broadcast %cst : f32 to vector<8x128xf32>
      %c0 = arith.constant 0 : index
      %c0_6 = arith.constant 0 : index
      %16 = vector.load %arg10[%c0, %c0_6] : memref<8x128xf32, #tpu.memory_space<vmem>>, vector<8x128xf32>
      tpu.vector_store %arg10[%c0, %c0_6], %15 {strides = array<i32>} : memref<8x128xf32, #tpu.memory_space<vmem>>, vector<8x128xf32>,
      %cst_7 = arith.constant 0.000000e+00 : f32
      %17 = vector.broadcast %cst_7 : f32 to vector<8x128xf32>
      %c0_8 = arith.constant 0 : index
      %c0_9 = arith.constant 0 : index
      %18 = vector.load %arg11[%c0_8, %c0_9] : memref<8x128xf32, #tpu.memory_space<vmem>>, vector<8x128xf32>
      tpu.vector_store %arg11[%c0_8, %c0_9], %17 {strides = array<i32>} : memref<8x128xf32, #tpu.memory_space<vmem>>, vector<8x128xf32>,
    } else {
    }
    %3 = arith.index_cast %arg0 : i32 to index
    %4 = arith.index_cast %arg1 : i32 to index
    %5 = memref.load %arg2[%3, %4] : memref<1x1xi32, #tpu.memory_space<smem>>
    %c0_i32_1 = arith.constant 0 : i32
    %6 = arith.cmpi sgt, %5, %c0_i32_1 : i32
    %true = arith.constant true
    %7 = arith.xori %6, %true : i1
    %8 = arith.extui %7 : i1 to i32
    %c0_i32_2 = arith.constant 0 : i32
    %9 = arith.cmpi ne, %8, %c0_i32_2 : i32
    scf.if %9 {
      %cst = arith.constant 0.000000e+00 : f32
      %15 = vector.broadcast %cst : f32 to vector<8x8x128xf32>
      %c0 = arith.constant 0 : index
      %c0_6 = arith.constant 0 : index
      %c0_7 = arith.constant 0 : index
      %16 = vector.load %arg8[%c0, %c0_6, %c0_7] : memref<8x8x128xf32, #tpu.memory_space<vmem>>, vector<8x8x128xf32>
      tpu.vector_store %arg8[%c0, %c0_6, %c0_7], %15 {strides = array<i32>} : memref<8x8x128xf32, #tpu.memory_space<vmem>>, vector<8x8x128xf32>,
    } else {
    }
    %10 = arith.extui %6 : i1 to i32
    %c0_i32_3 = arith.constant 0 : i32
    %11 = arith.cmpi ne, %10, %c0_i32_3 : i32
    scf.if %11 {
      %c0 = arith.constant 0 : index
      %c0_6 = arith.constant 0 : index
      %c0_7 = arith.constant 0 : index
      %15 = vector.load %arg4[%c0, %c0_6, %c0_7] : memref<8x8x16xbf16, #tpu.memory_space<vmem>>, vector<8x8x16xbf16>
      %16 = vector.shape_cast %15 : vector<8x8x16xbf16> to vector<64x16xbf16>
      %c0_8 = arith.constant 0 : index
      %c0_9 = arith.constant 0 : index
      %17 = vector.load %arg5[%c0_8, %c0_9] : memref<16x512xbf16, #tpu.memory_space<vmem>>, vector<16x512xbf16>
      %cst = arith.constant dense<0.000000e+00> : vector<64x512xf32>
      %18 = tpu.matmul %16, %17, %cst {dimension_numbers = #tpu.dot_dimension_numbers<[1], [0], [0], [1], [0, 0, 1, 1], [], []>} : vector<64x16xbf16>, vector<16x512xbf16>, vector<64x512xf32> -> vector<64x512xf32>
      %c0_10 = arith.constant 0 : index
      %c0_11 = arith.constant 0 : index
      %19 = vector.load %arg7[%c0_10, %c0_11] : memref<1x512xf32, #tpu.memory_space<vmem>>, vector<1x512xf32>
      %20 = vector.broadcast %19 : vector<1x512xf32> to vector<64x512xf32>
      %21 = arith.addf %18, %20 : vector<64x512xf32>
      %c0_12 = arith.constant 0 : index
      %c0_13 = arith.constant 0 : index
      %22 = vector.load %arg12[%c0_12, %c0_13] : memref<64x512xf32, #tpu.memory_space<vmem>>, vector<64x512xf32>
      tpu.vector_store %arg12[%c0_12, %c0_13], %21 {strides = array<i32>} : memref<64x512xf32, #tpu.memory_space<vmem>>, vector<64x512xf32>,
      %c0_14 = arith.constant 0 : index
      %c0_15 = arith.constant 0 : index
      %23 = vector.load %arg6[%c0_14, %c0_15] : memref<128x512xbf16, #tpu.memory_space<vmem>>, vector<128x512xbf16>
      %c0_16 = arith.constant 0 : index
      %c0_17 = arith.constant 0 : index
      %24 = vector.load %arg3[%c0_16, %c0_17] : memref<8x1xi32, #tpu.memory_space<vmem>>, vector<8x1xi32>
      %c8_i32 = arith.constant 8 : i32
      %25 = arith.muli %arg1, %c8_i32 : i32
      %26 = vector.broadcast %25 : i32 to vector<8x1xi32>
      %27 = arith.subi %24, %26 : vector<8x1xi32>
      %c0_i32_18 = arith.constant 0 : i32
      %c0_19 = arith.constant 0 : index
      %c0_20 = arith.constant 0 : index
      %28 = vector.load %arg10[%c0_19, %c0_20] : memref<8x128xf32, #tpu.memory_space<vmem>>, vector<8x128xf32>
      %c0_21 = arith.constant 0 : index
      %c0_22 = arith.constant 0 : index
      %29 = vector.load %arg11[%c0_21, %c0_22] : memref<8x128xf32, #tpu.memory_space<vmem>>, vector<8x128xf32>
      %c8_i32_23 = arith.constant 8 : i32
      %30 = arith.muli %c0_i32_18, %c8_i32_23 : i32
      %31 = tpu.assume_multiple %30, 8 : i32
      %32 = arith.index_cast %31 : i32 to index
      %c0_24 = arith.constant 0 : index
      %33 = vector.load %arg12[%32, %c0_24] : memref<64x512xf32, #tpu.memory_space<vmem>>, vector<8x512xf32>
      %34 = arith.truncf %28 : vector<8x128xf32> to vector<8x128xbf16>
      %cst_25 = arith.constant dense<0.000000e+00> : vector<8x512xf32>
      %35 = tpu.matmul %34, %23, %cst_25 {dimension_numbers = #tpu.dot_dimension_numbers<[1], [0], [0], [1], [0, 0, 1, 1], [], []>} : vector<8x128xbf16>, vector<128x512xbf16>, vector<8x512xf32> -> vector<8x512xf32>
      %36 = arith.addf %33, %35 : vector<8x512xf32>
      %37 = vector.extract_strided_slice %36 {offsets = [0, 0], sizes = [8, 128], strides = [1, 1]} : vector<8x512xf32> to vector<8x128xf32>
      %38 = arith.negf %37 : vector<8x128xf32>
      %39 = math.exp %38 : vector<8x128xf32>
      %cst_26 = arith.constant 1.000000e+00 : f32
      %40 = vector.broadcast %cst_26 : f32 to vector<8x128xf32>
      %41 = arith.addf %40, %39 : vector<8x128xf32>
      %42 = arith.divf %40, %41 : vector<8x128xf32>
      %43 = vector.extract_strided_slice %36 {offsets = [0, 128], sizes = [8, 128], strides = [1, 1]} : vector<8x512xf32> to vector<8x128xf32>
      %44 = arith.negf %43 : vector<8x128xf32>
      %45 = math.exp %44 : vector<8x128xf32>
      %cst_27 = arith.constant 1.000000e+00 : f32
      %46 = vector.broadcast %cst_27 : f32 to vector<8x128xf32>
      %47 = arith.addf %46, %45 : vector<8x128xf32>
      %48 = arith.divf %46, %47 : vector<8x128xf32>
      %49 = vector.extract_strided_slice %36 {offsets = [0, 256], sizes = [8, 128], strides = [1, 1]} : vector<8x512xf32> to vector<8x128xf32>
      %50 = math.tanh %49 : vector<8x128xf32>
      %51 = vector.extract_strided_slice %36 {offsets = [0, 384], sizes = [8, 128], strides = [1, 1]} : vector<8x512xf32> to vector<8x128xf32>
      %52 = arith.negf %51 : vector<8x128xf32>
      %53 = math.exp %52 : vector<8x128xf32>
      %cst_28 = arith.constant 1.000000e+00 : f32
      %54 = vector.broadcast %cst_28 : f32 to vector<8x128xf32>
      %55 = arith.addf %54, %53 : vector<8x128xf32>
      %56 = arith.divf %54, %55 : vector<8x128xf32>
      %57 = arith.mulf %48, %29 : vector<8x128xf32>
      %58 = arith.mulf %42, %50 : vector<8x128xf32>
      %59 = arith.addf %57, %58 : vector<8x128xf32>
      %60 = math.tanh %59 : vector<8x128xf32>
      %61 = arith.mulf %56, %60 : vector<8x128xf32>
      %62 = vector.broadcast %c0_i32_18 : i32 to vector<8x1xi32>
      %63 = arith.cmpi sgt, %27, %62 : vector<8x1xi32>
      %64 = arith.extui %63 : vector<8x1xi1> to vector<8x1xi32>
      %65 = arith.sitofp %64 : vector<8x1xi32> to vector<8x1xf32>
      %66 = vector.shape_cast %65 : vector<8x1xf32> to vector<8x1xf32>
      %67 = vector.broadcast %66 : vector<8x1xf32> to vector<8x128xf32>
      %cst_29 = arith.constant 1.000000e+00 : f32
      %68 = vector.broadcast %cst_29 : f32 to vector<8x128xf32>
      %69 = arith.subf %68, %67 : vector<8x128xf32>
      %70 = arith.mulf %67, %59 : vector<8x128xf32>
      %71 = arith.mulf %69, %29 : vector<8x128xf32>
      %72 = arith.addf %70, %71 : vector<8x128xf32>
      %c0_30 = arith.constant 0 : index
      %c0_31 = arith.constant 0 : index
      %73 = vector.load %arg11[%c0_30, %c0_31] : memref<8x128xf32, #tpu.memory_space<vmem>>, vector<8x128xf32>
      tpu.vector_store %arg11[%c0_30, %c0_31], %72 {strides = array<i32>} : memref<8x128xf32, #tpu.memory_space<vmem>>, vector<8x128xf32>,
      %74 = arith.mulf %67, %61 : vector<8x128xf32>
      %75 = arith.mulf %69, %28 : vector<8x128xf32>
      %76 = arith.addf %74, %75 : vector<8x128xf32>
      %c0_32 = arith.constant 0 : index
      %c0_33 = arith.constant 0 : index
      %77 = vector.load %arg10[%c0_32, %c0_33] : memref<8x128xf32, #tpu.memory_space<vmem>>, vector<8x128xf32>
      tpu.vector_store %arg10[%c0_32, %c0_33], %76 {strides = array<i32>} : memref<8x128xf32, #tpu.memory_space<vmem>>, vector<8x128xf32>,
      %78 = arith.mulf %67, %61 : vector<8x128xf32>
      %79 = arith.index_cast %c0_i32_18 : i32 to index
      %c0_34 = arith.constant 0 : index
      %c0_35 = arith.constant 0 : index
      %80 = vector.load %arg8[%79, %c0_34, %c0_35] : memref<8x8x128xf32, #tpu.memory_space<vmem>>, vector<1x8x128xf32>
      %81 = vector.shape_cast %80 : vector<1x8x128xf32> to vector<8x128xf32>
      %82 = vector.shape_cast %78 : vector<8x128xf32> to vector<1x8x128xf32>
      tpu.vector_store %arg8[%79, %c0_34, %c0_35], %82 {strides = array<i32>} : memref<8x8x128xf32, #tpu.memory_space<vmem>>, vector<1x8x128xf32>,
      %c1_i32 = arith.constant 1 : i32
      %c0_36 = arith.constant 0 : index
      %c0_37 = arith.constant 0 : index
      %83 = vector.load %arg10[%c0_36, %c0_37] : memref<8x128xf32, #tpu.memory_space<vmem>>, vector<8x128xf32>
      %c0_38 = arith.constant 0 : index
      %c0_39 = arith.constant 0 : index
      %84 = vector.load %arg11[%c0_38, %c0_39] : memref<8x128xf32, #tpu.memory_space<vmem>>, vector<8x128xf32>
      %c8_i32_40 = arith.constant 8 : i32
      %85 = arith.muli %c1_i32, %c8_i32_40 : i32
      %86 = tpu.assume_multiple %85, 8 : i32
      %87 = arith.index_cast %86 : i32 to index
      %c0_41 = arith.constant 0 : index
      %88 = vector.load %arg12[%87, %c0_41] : memref<64x512xf32, #tpu.memory_space<vmem>>, vector<8x512xf32>
      %89 = arith.truncf %83 : vector<8x128xf32> to vector<8x128xbf16>
      %cst_42 = arith.constant dense<0.000000e+00> : vector<8x512xf32>
      %90 = tpu.matmul %89, %23, %cst_42 {dimension_numbers = #tpu.dot_dimension_numbers<[1], [0], [0], [1], [0, 0, 1, 1], [], []>} : vector<8x128xbf16>, vector<128x512xbf16>, vector<8x512xf32> -> vector<8x512xf32>
      %91 = arith.addf %88, %90 : vector<8x512xf32>
      %92 = vector.extract_strided_slice %91 {offsets = [0, 0], sizes = [8, 128], strides = [1, 1]} : vector<8x512xf32> to vector<8x128xf32>
      %93 = arith.negf %92 : vector<8x128xf32>
      %94 = math.exp %93 : vector<8x128xf32>
      %cst_43 = arith.constant 1.000000e+00 : f32
      %95 = vector.broadcast %cst_43 : f32 to vector<8x128xf32>
      %96 = arith.addf %95, %94 : vector<8x128xf32>
      %97 = arith.divf %95, %96 : vector<8x128xf32>
      %98 = vector.extract_strided_slice %91 {offsets = [0, 128], sizes = [8, 128], strides = [1, 1]} : vector<8x512xf32> to vector<8x128xf32>
      %99 = arith.negf %98 : vector<8x128xf32>
      %100 = math.exp %99 : vector<8x128xf32>
      %cst_44 = arith.constant 1.000000e+00 : f32
      %101 = vector.broadcast %cst_44 : f32 to vector<8x128xf32>
      %102 = arith.addf %101, %100 : vector<8x128xf32>
      %103 = arith.divf %101, %102 : vector<8x128xf32>
      %104 = vector.extract_strided_slice %91 {offsets = [0, 256], sizes = [8, 128], strides = [1, 1]} : vector<8x512xf32> to vector<8x128xf32>
      %105 = math.tanh %104 : vector<8x128xf32>
      %106 = vector.extract_strided_slice %91 {offsets = [0, 384], sizes = [8, 128], strides = [1, 1]} : vector<8x512xf32> to vector<8x128xf32>
      %107 = arith.negf %106 : vector<8x128xf32>
      %108 = math.exp %107 : vector<8x128xf32>
      %cst_45 = arith.constant 1.000000e+00 : f32
      %109 = vector.broadcast %cst_45 : f32 to vector<8x128xf32>
      %110 = arith.addf %109, %108 : vector<8x128xf32>
      %111 = arith.divf %109, %110 : vector<8x128xf32>
      %112 = arith.mulf %103, %84 : vector<8x128xf32>
      %113 = arith.mulf %97, %105 : vector<8x128xf32>
      %114 = arith.addf %112, %113 : vector<8x128xf32>
      %115 = math.tanh %114 : vector<8x128xf32>
      %116 = arith.mulf %111, %115 : vector<8x128xf32>
      %117 = vector.broadcast %c1_i32 : i32 to vector<8x1xi32>
      %118 = arith.cmpi sgt, %27, %117 : vector<8x1xi32>
      %119 = arith.extui %118 : vector<8x1xi1> to vector<8x1xi32>
      %120 = arith.sitofp %119 : vector<8x1xi32> to vector<8x1xf32>
      %121 = vector.shape_cast %120 : vector<8x1xf32> to vector<8x1xf32>
      %122 = vector.broadcast %121 : vector<8x1xf32> to vector<8x128xf32>
      %cst_46 = arith.constant 1.000000e+00 : f32
      %123 = vector.broadcast %cst_46 : f32 to vector<8x128xf32>
      %124 = arith.subf %123, %122 : vector<8x128xf32>
      %125 = arith.mulf %122, %114 : vector<8x128xf32>
      %126 = arith.mulf %124, %84 : vector<8x128xf32>
      %127 = arith.addf %125, %126 : vector<8x128xf32>
      %c0_47 = arith.constant 0 : index
      %c0_48 = arith.constant 0 : index
      %128 = vector.load %arg11[%c0_47, %c0_48] : memref<8x128xf32, #tpu.memory_space<vmem>>, vector<8x128xf32>
      tpu.vector_store %arg11[%c0_47, %c0_48], %127 {strides = array<i32>} : memref<8x128xf32, #tpu.memory_space<vmem>>, vector<8x128xf32>,
      %129 = arith.mulf %122, %116 : vector<8x128xf32>
      %130 = arith.mulf %124, %83 : vector<8x128xf32>
      %131 = arith.addf %129, %130 : vector<8x128xf32>
      %c0_49 = arith.constant 0 : index
      %c0_50 = arith.constant 0 : index
      %132 = vector.load %arg10[%c0_49, %c0_50] : memref<8x128xf32, #tpu.memory_space<vmem>>, vector<8x128xf32>
      tpu.vector_store %arg10[%c0_49, %c0_50], %131 {strides = array<i32>} : memref<8x128xf32, #tpu.memory_space<vmem>>, vector<8x128xf32>,
      %133 = arith.mulf %122, %116 : vector<8x128xf32>
      %134 = arith.index_cast %c1_i32 : i32 to index
      %c0_51 = arith.constant 0 : index
      %c0_52 = arith.constant 0 : index
      %135 = vector.load %arg8[%134, %c0_51, %c0_52] : memref<8x8x128xf32, #tpu.memory_space<vmem>>, vector<1x8x128xf32>
      %136 = vector.shape_cast %135 : vector<1x8x128xf32> to vector<8x128xf32>
      %137 = vector.shape_cast %133 : vector<8x128xf32> to vector<1x8x128xf32>
      tpu.vector_store %arg8[%134, %c0_51, %c0_52], %137 {strides = array<i32>} : memref<8x8x128xf32, #tpu.memory_space<vmem>>, vector<1x8x128xf32>,
      %c2_i32 = arith.constant 2 : i32
      %c0_53 = arith.constant 0 : index
      %c0_54 = arith.constant 0 : index
      %138 = vector.load %arg10[%c0_53, %c0_54] : memref<8x128xf32, #tpu.memory_space<vmem>>, vector<8x128xf32>
      %c0_55 = arith.constant 0 : index
      %c0_56 = arith.constant 0 : index
      %139 = vector.load %arg11[%c0_55, %c0_56] : memref<8x128xf32, #tpu.memory_space<vmem>>, vector<8x128xf32>
      %c8_i32_57 = arith.constant 8 : i32
      %140 = arith.muli %c2_i32, %c8_i32_57 : i32
      %141 = tpu.assume_multiple %140, 8 : i32
      %142 = arith.index_cast %141 : i32 to index
      %c0_58 = arith.constant 0 : index
      %143 = vector.load %arg12[%142, %c0_58] : memref<64x512xf32, #tpu.memory_space<vmem>>, vector<8x512xf32>
      %144 = arith.truncf %138 : vector<8x128xf32> to vector<8x128xbf16>
      %cst_59 = arith.constant dense<0.000000e+00> : vector<8x512xf32>
      %145 = tpu.matmul %144, %23, %cst_59 {dimension_numbers = #tpu.dot_dimension_numbers<[1], [0], [0], [1], [0, 0, 1, 1], [], []>} : vector<8x128xbf16>, vector<128x512xbf16>, vector<8x512xf32> -> vector<8x512xf32>
      %146 = arith.addf %143, %145 : vector<8x512xf32>
      %147 = vector.extract_strided_slice %146 {offsets = [0, 0], sizes = [8, 128], strides = [1, 1]} : vector<8x512xf32> to vector<8x128xf32>
      %148 = arith.negf %147 : vector<8x128xf32>
      %149 = math.exp %148 : vector<8x128xf32>
      %cst_60 = arith.constant 1.000000e+00 : f32
      %150 = vector.broadcast %cst_60 : f32 to vector<8x128xf32>
      %151 = arith.addf %150, %149 : vector<8x128xf32>
      %152 = arith.divf %150, %151 : vector<8x128xf32>
      %153 = vector.extract_strided_slice %146 {offsets = [0, 128], sizes = [8, 128], strides = [1, 1]} : vector<8x512xf32> to vector<8x128xf32>
      %154 = arith.negf %153 : vector<8x128xf32>
      %155 = math.exp %154 : vector<8x128xf32>
      %cst_61 = arith.constant 1.000000e+00 : f32
      %156 = vector.broadcast %cst_61 : f32 to vector<8x128xf32>
      %157 = arith.addf %156, %155 : vector<8x128xf32>
      %158 = arith.divf %156, %157 : vector<8x128xf32>
      %159 = vector.extract_strided_slice %146 {offsets = [0, 256], sizes = [8, 128], strides = [1, 1]} : vector<8x512xf32> to vector<8x128xf32>
      %160 = math.tanh %159 : vector<8x128xf32>
      %161 = vector.extract_strided_slice %146 {offsets = [0, 384], sizes = [8, 128], strides = [1, 1]} : vector<8x512xf32> to vector<8x128xf32>
      %162 = arith.negf %161 : vector<8x128xf32>
      %163 = math.exp %162 : vector<8x128xf32>
      %cst_62 = arith.constant 1.000000e+00 : f32
      %164 = vector.broadcast %cst_62 : f32 to vector<8x128xf32>
      %165 = arith.addf %164, %163 : vector<8x128xf32>
      %166 = arith.divf %164, %165 : vector<8x128xf32>
      %167 = arith.mulf %158, %139 : vector<8x128xf32>
      %168 = arith.mulf %152, %160 : vector<8x128xf32>
      %169 = arith.addf %167, %168 : vector<8x128xf32>
      %170 = math.tanh %169 : vector<8x128xf32>
      %171 = arith.mulf %166, %170 : vector<8x128xf32>
      %172 = vector.broadcast %c2_i32 : i32 to vector<8x1xi32>
      %173 = arith.cmpi sgt, %27, %172 : vector<8x1xi32>
      %174 = arith.extui %173 : vector<8x1xi1> to vector<8x1xi32>
      %175 = arith.sitofp %174 : vector<8x1xi32> to vector<8x1xf32>
      %176 = vector.shape_cast %175 : vector<8x1xf32> to vector<8x1xf32>
      %177 = vector.broadcast %176 : vector<8x1xf32> to vector<8x128xf32>
      %cst_63 = arith.constant 1.000000e+00 : f32
      %178 = vector.broadcast %cst_63 : f32 to vector<8x128xf32>
      %179 = arith.subf %178, %177 : vector<8x128xf32>
      %180 = arith.mulf %177, %169 : vector<8x128xf32>
      %181 = arith.mulf %179, %139 : vector<8x128xf32>
      %182 = arith.addf %180, %181 : vector<8x128xf32>
      %c0_64 = arith.constant 0 : index
      %c0_65 = arith.constant 0 : index
      %183 = vector.load %arg11[%c0_64, %c0_65] : memref<8x128xf32, #tpu.memory_space<vmem>>, vector<8x128xf32>
      tpu.vector_store %arg11[%c0_64, %c0_65], %182 {strides = array<i32>} : memref<8x128xf32, #tpu.memory_space<vmem>>, vector<8x128xf32>,
      %184 = arith.mulf %177, %171 : vector<8x128xf32>
      %185 = arith.mulf %179, %138 : vector<8x128xf32>
      %186 = arith.addf %184, %185 : vector<8x128xf32>
      %c0_66 = arith.constant 0 : index
      %c0_67 = arith.constant 0 : index
      %187 = vector.load %arg10[%c0_66, %c0_67] : memref<8x128xf32, #tpu.memory_space<vmem>>, vector<8x128xf32>
      tpu.vector_store %arg10[%c0_66, %c0_67], %186 {strides = array<i32>} : memref<8x128xf32, #tpu.memory_space<vmem>>, vector<8x128xf32>,
      %188 = arith.mulf %177, %171 : vector<8x128xf32>
      %189 = arith.index_cast %c2_i32 : i32 to index
      %c0_68 = arith.constant 0 : index
      %c0_69 = arith.constant 0 : index
      %190 = vector.load %arg8[%189, %c0_68, %c0_69] : memref<8x8x128xf32, #tpu.memory_space<vmem>>, vector<1x8x128xf32>
      %191 = vector.shape_cast %190 : vector<1x8x128xf32> to vector<8x128xf32>
      %192 = vector.shape_cast %188 : vector<8x128xf32> to vector<1x8x128xf32>
      tpu.vector_store %arg8[%189, %c0_68, %c0_69], %192 {strides = array<i32>} : memref<8x8x128xf32, #tpu.memory_space<vmem>>, vector<1x8x128xf32>,
      %c3_i32 = arith.constant 3 : i32
      %c0_70 = arith.constant 0 : index
      %c0_71 = arith.constant 0 : index
      %193 = vector.load %arg10[%c0_70, %c0_71] : memref<8x128xf32, #tpu.memory_space<vmem>>, vector<8x128xf32>
      %c0_72 = arith.constant 0 : index
      %c0_73 = arith.constant 0 : index
      %194 = vector.load %arg11[%c0_72, %c0_73] : memref<8x128xf32, #tpu.memory_space<vmem>>, vector<8x128xf32>
      %c8_i32_74 = arith.constant 8 : i32
      %195 = arith.muli %c3_i32, %c8_i32_74 : i32
      %196 = tpu.assume_multiple %195, 8 : i32
      %197 = arith.index_cast %196 : i32 to index
      %c0_75 = arith.constant 0 : index
      %198 = vector.load %arg12[%197, %c0_75] : memref<64x512xf32, #tpu.memory_space<vmem>>, vector<8x512xf32>
      %199 = arith.truncf %193 : vector<8x128xf32> to vector<8x128xbf16>
      %cst_76 = arith.constant dense<0.000000e+00> : vector<8x512xf32>
      %200 = tpu.matmul %199, %23, %cst_76 {dimension_numbers = #tpu.dot_dimension_numbers<[1], [0], [0], [1], [0, 0, 1, 1], [], []>} : vector<8x128xbf16>, vector<128x512xbf16>, vector<8x512xf32> -> vector<8x512xf32>
      %201 = arith.addf %198, %200 : vector<8x512xf32>
      %202 = vector.extract_strided_slice %201 {offsets = [0, 0], sizes = [8, 128], strides = [1, 1]} : vector<8x512xf32> to vector<8x128xf32>
      %203 = arith.negf %202 : vector<8x128xf32>
      %204 = math.exp %203 : vector<8x128xf32>
      %cst_77 = arith.constant 1.000000e+00 : f32
      %205 = vector.broadcast %cst_77 : f32 to vector<8x128xf32>
      %206 = arith.addf %205, %204 : vector<8x128xf32>
      %207 = arith.divf %205, %206 : vector<8x128xf32>
      %208 = vector.extract_strided_slice %201 {offsets = [0, 128], sizes = [8, 128], strides = [1, 1]} : vector<8x512xf32> to vector<8x128xf32>
      %209 = arith.negf %208 : vector<8x128xf32>
      %210 = math.exp %209 : vector<8x128xf32>
      %cst_78 = arith.constant 1.000000e+00 : f32
      %211 = vector.broadcast %cst_78 : f32 to vector<8x128xf32>
      %212 = arith.addf %211, %210 : vector<8x128xf32>
      %213 = arith.divf %211, %212 : vector<8x128xf32>
      %214 = vector.extract_strided_slice %201 {offsets = [0, 256], sizes = [8, 128], strides = [1, 1]} : vector<8x512xf32> to vector<8x128xf32>
      %215 = math.tanh %214 : vector<8x128xf32>
      %216 = vector.extract_strided_slice %201 {offsets = [0, 384], sizes = [8, 128], strides = [1, 1]} : vector<8x512xf32> to vector<8x128xf32>
      %217 = arith.negf %216 : vector<8x128xf32>
      %218 = math.exp %217 : vector<8x128xf32>
      %cst_79 = arith.constant 1.000000e+00 : f32
      %219 = vector.broadcast %cst_79 : f32 to vector<8x128xf32>
      %220 = arith.addf %219, %218 : vector<8x128xf32>
      %221 = arith.divf %219, %220 : vector<8x128xf32>
      %222 = arith.mulf %213, %194 : vector<8x128xf32>
      %223 = arith.mulf %207, %215 : vector<8x128xf32>
      %224 = arith.addf %222, %223 : vector<8x128xf32>
      %225 = math.tanh %224 : vector<8x128xf32>
      %226 = arith.mulf %221, %225 : vector<8x128xf32>
      %227 = vector.broadcast %c3_i32 : i32 to vector<8x1xi32>
      %228 = arith.cmpi sgt, %27, %227 : vector<8x1xi32>
      %229 = arith.extui %228 : vector<8x1xi1> to vector<8x1xi32>
      %230 = arith.sitofp %229 : vector<8x1xi32> to vector<8x1xf32>
      %231 = vector.shape_cast %230 : vector<8x1xf32> to vector<8x1xf32>
      %232 = vector.broadcast %231 : vector<8x1xf32> to vector<8x128xf32>
      %cst_80 = arith.constant 1.000000e+00 : f32
      %233 = vector.broadcast %cst_80 : f32 to vector<8x128xf32>
      %234 = arith.subf %233, %232 : vector<8x128xf32>
      %235 = arith.mulf %232, %224 : vector<8x128xf32>
      %236 = arith.mulf %234, %194 : vector<8x128xf32>
      %237 = arith.addf %235, %236 : vector<8x128xf32>
      %c0_81 = arith.constant 0 : index
      %c0_82 = arith.constant 0 : index
      %238 = vector.load %arg11[%c0_81, %c0_82] : memref<8x128xf32, #tpu.memory_space<vmem>>, vector<8x128xf32>
      tpu.vector_store %arg11[%c0_81, %c0_82], %237 {strides = array<i32>} : memref<8x128xf32, #tpu.memory_space<vmem>>, vector<8x128xf32>,
      %239 = arith.mulf %232, %226 : vector<8x128xf32>
      %240 = arith.mulf %234, %193 : vector<8x128xf32>
      %241 = arith.addf %239, %240 : vector<8x128xf32>
      %c0_83 = arith.constant 0 : index
      %c0_84 = arith.constant 0 : index
      %242 = vector.load %arg10[%c0_83, %c0_84] : memref<8x128xf32, #tpu.memory_space<vmem>>, vector<8x128xf32>
      tpu.vector_store %arg10[%c0_83, %c0_84], %241 {strides = array<i32>} : memref<8x128xf32, #tpu.memory_space<vmem>>, vector<8x128xf32>,
      %243 = arith.mulf %232, %226 : vector<8x128xf32>
      %244 = arith.index_cast %c3_i32 : i32 to index
      %c0_85 = arith.constant 0 : index
      %c0_86 = arith.constant 0 : index
      %245 = vector.load %arg8[%244, %c0_85, %c0_86] : memref<8x8x128xf32, #tpu.memory_space<vmem>>, vector<1x8x128xf32>
      %246 = vector.shape_cast %245 : vector<1x8x128xf32> to vector<8x128xf32>
      %247 = vector.shape_cast %243 : vector<8x128xf32> to vector<1x8x128xf32>
      tpu.vector_store %arg8[%244, %c0_85, %c0_86], %247 {strides = array<i32>} : memref<8x8x128xf32, #tpu.memory_space<vmem>>, vector<1x8x128xf32>,
      %c4_i32 = arith.constant 4 : i32
      %c0_87 = arith.constant 0 : index
      %c0_88 = arith.constant 0 : index
      %248 = vector.load %arg10[%c0_87, %c0_88] : memref<8x128xf32, #tpu.memory_space<vmem>>, vector<8x128xf32>
      %c0_89 = arith.constant 0 : index
      %c0_90 = arith.constant 0 : index
      %249 = vector.load %arg11[%c0_89, %c0_90] : memref<8x128xf32, #tpu.memory_space<vmem>>, vector<8x128xf32>
      %c8_i32_91 = arith.constant 8 : i32
      %250 = arith.muli %c4_i32, %c8_i32_91 : i32
      %251 = tpu.assume_multiple %250, 8 : i32
      %252 = arith.index_cast %251 : i32 to index
      %c0_92 = arith.constant 0 : index
      %253 = vector.load %arg12[%252, %c0_92] : memref<64x512xf32, #tpu.memory_space<vmem>>, vector<8x512xf32>
      %254 = arith.truncf %248 : vector<8x128xf32> to vector<8x128xbf16>
      %cst_93 = arith.constant dense<0.000000e+00> : vector<8x512xf32>
      %255 = tpu.matmul %254, %23, %cst_93 {dimension_numbers = #tpu.dot_dimension_numbers<[1], [0], [0], [1], [0, 0, 1, 1], [], []>} : vector<8x128xbf16>, vector<128x512xbf16>, vector<8x512xf32> -> vector<8x512xf32>
      %256 = arith.addf %253, %255 : vector<8x512xf32>
      %257 = vector.extract_strided_slice %256 {offsets = [0, 0], sizes = [8, 128], strides = [1, 1]} : vector<8x512xf32> to vector<8x128xf32>
      %258 = arith.negf %257 : vector<8x128xf32>
      %259 = math.exp %258 : vector<8x128xf32>
      %cst_94 = arith.constant 1.000000e+00 : f32
      %260 = vector.broadcast %cst_94 : f32 to vector<8x128xf32>
      %261 = arith.addf %260, %259 : vector<8x128xf32>
      %262 = arith.divf %260, %261 : vector<8x128xf32>
      %263 = vector.extract_strided_slice %256 {offsets = [0, 128], sizes = [8, 128], strides = [1, 1]} : vector<8x512xf32> to vector<8x128xf32>
      %264 = arith.negf %263 : vector<8x128xf32>
      %265 = math.exp %264 : vector<8x128xf32>
      %cst_95 = arith.constant 1.000000e+00 : f32
      %266 = vector.broadcast %cst_95 : f32 to vector<8x128xf32>
      %267 = arith.addf %266, %265 : vector<8x128xf32>
      %268 = arith.divf %266, %267 : vector<8x128xf32>
      %269 = vector.extract_strided_slice %256 {offsets = [0, 256], sizes = [8, 128], strides = [1, 1]} : vector<8x512xf32> to vector<8x128xf32>
      %270 = math.tanh %269 : vector<8x128xf32>
      %271 = vector.extract_strided_slice %256 {offsets = [0, 384], sizes = [8, 128], strides = [1, 1]} : vector<8x512xf32> to vector<8x128xf32>
      %272 = arith.negf %271 : vector<8x128xf32>
      %273 = math.exp %272 : vector<8x128xf32>
      %cst_96 = arith.constant 1.000000e+00 : f32
      %274 = vector.broadcast %cst_96 : f32 to vector<8x128xf32>
      %275 = arith.addf %274, %273 : vector<8x128xf32>
      %276 = arith.divf %274, %275 : vector<8x128xf32>
      %277 = arith.mulf %268, %249 : vector<8x128xf32>
      %278 = arith.mulf %262, %270 : vector<8x128xf32>
      %279 = arith.addf %277, %278 : vector<8x128xf32>
      %280 = math.tanh %279 : vector<8x128xf32>
      %281 = arith.mulf %276, %280 : vector<8x128xf32>
      %282 = vector.broadcast %c4_i32 : i32 to vector<8x1xi32>
      %283 = arith.cmpi sgt, %27, %282 : vector<8x1xi32>
      %284 = arith.extui %283 : vector<8x1xi1> to vector<8x1xi32>
      %285 = arith.sitofp %284 : vector<8x1xi32> to vector<8x1xf32>
      %286 = vector.shape_cast %285 : vector<8x1xf32> to vector<8x1xf32>
      %287 = vector.broadcast %286 : vector<8x1xf32> to vector<8x128xf32>
      %cst_97 = arith.constant 1.000000e+00 : f32
      %288 = vector.broadcast %cst_97 : f32 to vector<8x128xf32>
      %289 = arith.subf %288, %287 : vector<8x128xf32>
      %290 = arith.mulf %287, %279 : vector<8x128xf32>
      %291 = arith.mulf %289, %249 : vector<8x128xf32>
      %292 = arith.addf %290, %291 : vector<8x128xf32>
      %c0_98 = arith.constant 0 : index
      %c0_99 = arith.constant 0 : index
      %293 = vector.load %arg11[%c0_98, %c0_99] : memref<8x128xf32, #tpu.memory_space<vmem>>, vector<8x128xf32>
      tpu.vector_store %arg11[%c0_98, %c0_99], %292 {strides = array<i32>} : memref<8x128xf32, #tpu.memory_space<vmem>>, vector<8x128xf32>,
      %294 = arith.mulf %287, %281 : vector<8x128xf32>
      %295 = arith.mulf %289, %248 : vector<8x128xf32>
      %296 = arith.addf %294, %295 : vector<8x128xf32>
      %c0_100 = arith.constant 0 : index
      %c0_101 = arith.constant 0 : index
      %297 = vector.load %arg10[%c0_100, %c0_101] : memref<8x128xf32, #tpu.memory_space<vmem>>, vector<8x128xf32>
      tpu.vector_store %arg10[%c0_100, %c0_101], %296 {strides = array<i32>} : memref<8x128xf32, #tpu.memory_space<vmem>>, vector<8x128xf32>,
      %298 = arith.mulf %287, %281 : vector<8x128xf32>
      %299 = arith.index_cast %c4_i32 : i32 to index
      %c0_102 = arith.constant 0 : index
      %c0_103 = arith.constant 0 : index
      %300 = vector.load %arg8[%299, %c0_102, %c0_103] : memref<8x8x128xf32, #tpu.memory_space<vmem>>, vector<1x8x128xf32>
      %301 = vector.shape_cast %300 : vector<1x8x128xf32> to vector<8x128xf32>
      %302 = vector.shape_cast %298 : vector<8x128xf32> to vector<1x8x128xf32>
      tpu.vector_store %arg8[%299, %c0_102, %c0_103], %302 {strides = array<i32>} : memref<8x8x128xf32, #tpu.memory_space<vmem>>, vector<1x8x128xf32>,
      %c5_i32 = arith.constant 5 : i32
      %c0_104 = arith.constant 0 : index
      %c0_105 = arith.constant 0 : index
      %303 = vector.load %arg10[%c0_104, %c0_105] : memref<8x128xf32, #tpu.memory_space<vmem>>, vector<8x128xf32>
      %c0_106 = arith.constant 0 : index
      %c0_107 = arith.constant 0 : index
      %304 = vector.load %arg11[%c0_106, %c0_107] : memref<8x128xf32, #tpu.memory_space<vmem>>, vector<8x128xf32>
      %c8_i32_108 = arith.constant 8 : i32
      %305 = arith.muli %c5_i32, %c8_i32_108 : i32
      %306 = tpu.assume_multiple %305, 8 : i32
      %307 = arith.index_cast %306 : i32 to index
      %c0_109 = arith.constant 0 : index
      %308 = vector.load %arg12[%307, %c0_109] : memref<64x512xf32, #tpu.memory_space<vmem>>, vector<8x512xf32>
      %309 = arith.truncf %303 : vector<8x128xf32> to vector<8x128xbf16>
      %cst_110 = arith.constant dense<0.000000e+00> : vector<8x512xf32>
      %310 = tpu.matmul %309, %23, %cst_110 {dimension_numbers = #tpu.dot_dimension_numbers<[1], [0], [0], [1], [0, 0, 1, 1], [], []>} : vector<8x128xbf16>, vector<128x512xbf16>, vector<8x512xf32> -> vector<8x512xf32>
      %311 = arith.addf %308, %310 : vector<8x512xf32>
      %312 = vector.extract_strided_slice %311 {offsets = [0, 0], sizes = [8, 128], strides = [1, 1]} : vector<8x512xf32> to vector<8x128xf32>
      %313 = arith.negf %312 : vector<8x128xf32>
      %314 = math.exp %313 : vector<8x128xf32>
      %cst_111 = arith.constant 1.000000e+00 : f32
      %315 = vector.broadcast %cst_111 : f32 to vector<8x128xf32>
      %316 = arith.addf %315, %314 : vector<8x128xf32>
      %317 = arith.divf %315, %316 : vector<8x128xf32>
      %318 = vector.extract_strided_slice %311 {offsets = [0, 128], sizes = [8, 128], strides = [1, 1]} : vector<8x512xf32> to vector<8x128xf32>
      %319 = arith.negf %318 : vector<8x128xf32>
      %320 = math.exp %319 : vector<8x128xf32>
      %cst_112 = arith.constant 1.000000e+00 : f32
      %321 = vector.broadcast %cst_112 : f32 to vector<8x128xf32>
      %322 = arith.addf %321, %320 : vector<8x128xf32>
      %323 = arith.divf %321, %322 : vector<8x128xf32>
      %324 = vector.extract_strided_slice %311 {offsets = [0, 256], sizes = [8, 128], strides = [1, 1]} : vector<8x512xf32> to vector<8x128xf32>
      %325 = math.tanh %324 : vector<8x128xf32>
      %326 = vector.extract_strided_slice %311 {offsets = [0, 384], sizes = [8, 128], strides = [1, 1]} : vector<8x512xf32> to vector<8x128xf32>
      %327 = arith.negf %326 : vector<8x128xf32>
      %328 = math.exp %327 : vector<8x128xf32>
      %cst_113 = arith.constant 1.000000e+00 : f32
      %329 = vector.broadcast %cst_113 : f32 to vector<8x128xf32>
      %330 = arith.addf %329, %328 : vector<8x128xf32>
      %331 = arith.divf %329, %330 : vector<8x128xf32>
      %332 = arith.mulf %323, %304 : vector<8x128xf32>
      %333 = arith.mulf %317, %325 : vector<8x128xf32>
      %334 = arith.addf %332, %333 : vector<8x128xf32>
      %335 = math.tanh %334 : vector<8x128xf32>
      %336 = arith.mulf %331, %335 : vector<8x128xf32>
      %337 = vector.broadcast %c5_i32 : i32 to vector<8x1xi32>
      %338 = arith.cmpi sgt, %27, %337 : vector<8x1xi32>
      %339 = arith.extui %338 : vector<8x1xi1> to vector<8x1xi32>
      %340 = arith.sitofp %339 : vector<8x1xi32> to vector<8x1xf32>
      %341 = vector.shape_cast %340 : vector<8x1xf32> to vector<8x1xf32>
      %342 = vector.broadcast %341 : vector<8x1xf32> to vector<8x128xf32>
      %cst_114 = arith.constant 1.000000e+00 : f32
      %343 = vector.broadcast %cst_114 : f32 to vector<8x128xf32>
      %344 = arith.subf %343, %342 : vector<8x128xf32>
      %345 = arith.mulf %342, %334 : vector<8x128xf32>
      %346 = arith.mulf %344, %304 : vector<8x128xf32>
      %347 = arith.addf %345, %346 : vector<8x128xf32>
      %c0_115 = arith.constant 0 : index
      %c0_116 = arith.constant 0 : index
      %348 = vector.load %arg11[%c0_115, %c0_116] : memref<8x128xf32, #tpu.memory_space<vmem>>, vector<8x128xf32>
      tpu.vector_store %arg11[%c0_115, %c0_116], %347 {strides = array<i32>} : memref<8x128xf32, #tpu.memory_space<vmem>>, vector<8x128xf32>,
      %349 = arith.mulf %342, %336 : vector<8x128xf32>
      %350 = arith.mulf %344, %303 : vector<8x128xf32>
      %351 = arith.addf %349, %350 : vector<8x128xf32>
      %c0_117 = arith.constant 0 : index
      %c0_118 = arith.constant 0 : index
      %352 = vector.load %arg10[%c0_117, %c0_118] : memref<8x128xf32, #tpu.memory_space<vmem>>, vector<8x128xf32>
      tpu.vector_store %arg10[%c0_117, %c0_118], %351 {strides = array<i32>} : memref<8x128xf32, #tpu.memory_space<vmem>>, vector<8x128xf32>,
      %353 = arith.mulf %342, %336 : vector<8x128xf32>
      %354 = arith.index_cast %c5_i32 : i32 to index
      %c0_119 = arith.constant 0 : index
      %c0_120 = arith.constant 0 : index
      %355 = vector.load %arg8[%354, %c0_119, %c0_120] : memref<8x8x128xf32, #tpu.memory_space<vmem>>, vector<1x8x128xf32>
      %356 = vector.shape_cast %355 : vector<1x8x128xf32> to vector<8x128xf32>
      %357 = vector.shape_cast %353 : vector<8x128xf32> to vector<1x8x128xf32>
      tpu.vector_store %arg8[%354, %c0_119, %c0_120], %357 {strides = array<i32>} : memref<8x8x128xf32, #tpu.memory_space<vmem>>, vector<1x8x128xf32>,
      %c6_i32 = arith.constant 6 : i32
      %c0_121 = arith.constant 0 : index
      %c0_122 = arith.constant 0 : index
      %358 = vector.load %arg10[%c0_121, %c0_122] : memref<8x128xf32, #tpu.memory_space<vmem>>, vector<8x128xf32>
      %c0_123 = arith.constant 0 : index
      %c0_124 = arith.constant 0 : index
      %359 = vector.load %arg11[%c0_123, %c0_124] : memref<8x128xf32, #tpu.memory_space<vmem>>, vector<8x128xf32>
      %c8_i32_125 = arith.constant 8 : i32
      %360 = arith.muli %c6_i32, %c8_i32_125 : i32
      %361 = tpu.assume_multiple %360, 8 : i32
      %362 = arith.index_cast %361 : i32 to index
      %c0_126 = arith.constant 0 : index
      %363 = vector.load %arg12[%362, %c0_126] : memref<64x512xf32, #tpu.memory_space<vmem>>, vector<8x512xf32>
      %364 = arith.truncf %358 : vector<8x128xf32> to vector<8x128xbf16>
      %cst_127 = arith.constant dense<0.000000e+00> : vector<8x512xf32>
      %365 = tpu.matmul %364, %23, %cst_127 {dimension_numbers = #tpu.dot_dimension_numbers<[1], [0], [0], [1], [0, 0, 1, 1], [], []>} : vector<8x128xbf16>, vector<128x512xbf16>, vector<8x512xf32> -> vector<8x512xf32>
      %366 = arith.addf %363, %365 : vector<8x512xf32>
      %367 = vector.extract_strided_slice %366 {offsets = [0, 0], sizes = [8, 128], strides = [1, 1]} : vector<8x512xf32> to vector<8x128xf32>
      %368 = arith.negf %367 : vector<8x128xf32>
      %369 = math.exp %368 : vector<8x128xf32>
      %cst_128 = arith.constant 1.000000e+00 : f32
      %370 = vector.broadcast %cst_128 : f32 to vector<8x128xf32>
      %371 = arith.addf %370, %369 : vector<8x128xf32>
      %372 = arith.divf %370, %371 : vector<8x128xf32>
      %373 = vector.extract_strided_slice %366 {offsets = [0, 128], sizes = [8, 128], strides = [1, 1]} : vector<8x512xf32> to vector<8x128xf32>
      %374 = arith.negf %373 : vector<8x128xf32>
      %375 = math.exp %374 : vector<8x128xf32>
      %cst_129 = arith.constant 1.000000e+00 : f32
      %376 = vector.broadcast %cst_129 : f32 to vector<8x128xf32>
      %377 = arith.addf %376, %375 : vector<8x128xf32>
      %378 = arith.divf %376, %377 : vector<8x128xf32>
      %379 = vector.extract_strided_slice %366 {offsets = [0, 256], sizes = [8, 128], strides = [1, 1]} : vector<8x512xf32> to vector<8x128xf32>
      %380 = math.tanh %379 : vector<8x128xf32>
      %381 = vector.extract_strided_slice %366 {offsets = [0, 384], sizes = [8, 128], strides = [1, 1]} : vector<8x512xf32> to vector<8x128xf32>
      %382 = arith.negf %381 : vector<8x128xf32>
      %383 = math.exp %382 : vector<8x128xf32>
      %cst_130 = arith.constant 1.000000e+00 : f32
      %384 = vector.broadcast %cst_130 : f32 to vector<8x128xf32>
      %385 = arith.addf %384, %383 : vector<8x128xf32>
      %386 = arith.divf %384, %385 : vector<8x128xf32>
      %387 = arith.mulf %378, %359 : vector<8x128xf32>
      %388 = arith.mulf %372, %380 : vector<8x128xf32>
      %389 = arith.addf %387, %388 : vector<8x128xf32>
      %390 = math.tanh %389 : vector<8x128xf32>
      %391 = arith.mulf %386, %390 : vector<8x128xf32>
      %392 = vector.broadcast %c6_i32 : i32 to vector<8x1xi32>
      %393 = arith.cmpi sgt, %27, %392 : vector<8x1xi32>
      %394 = arith.extui %393 : vector<8x1xi1> to vector<8x1xi32>
      %395 = arith.sitofp %394 : vector<8x1xi32> to vector<8x1xf32>
      %396 = vector.shape_cast %395 : vector<8x1xf32> to vector<8x1xf32>
      %397 = vector.broadcast %396 : vector<8x1xf32> to vector<8x128xf32>
      %cst_131 = arith.constant 1.000000e+00 : f32
      %398 = vector.broadcast %cst_131 : f32 to vector<8x128xf32>
      %399 = arith.subf %398, %397 : vector<8x128xf32>
      %400 = arith.mulf %397, %389 : vector<8x128xf32>
      %401 = arith.mulf %399, %359 : vector<8x128xf32>
      %402 = arith.addf %400, %401 : vector<8x128xf32>
      %c0_132 = arith.constant 0 : index
      %c0_133 = arith.constant 0 : index
      %403 = vector.load %arg11[%c0_132, %c0_133] : memref<8x128xf32, #tpu.memory_space<vmem>>, vector<8x128xf32>
      tpu.vector_store %arg11[%c0_132, %c0_133], %402 {strides = array<i32>} : memref<8x128xf32, #tpu.memory_space<vmem>>, vector<8x128xf32>,
      %404 = arith.mulf %397, %391 : vector<8x128xf32>
      %405 = arith.mulf %399, %358 : vector<8x128xf32>
      %406 = arith.addf %404, %405 : vector<8x128xf32>
      %c0_134 = arith.constant 0 : index
      %c0_135 = arith.constant 0 : index
      %407 = vector.load %arg10[%c0_134, %c0_135] : memref<8x128xf32, #tpu.memory_space<vmem>>, vector<8x128xf32>
      tpu.vector_store %arg10[%c0_134, %c0_135], %406 {strides = array<i32>} : memref<8x128xf32, #tpu.memory_space<vmem>>, vector<8x128xf32>,
      %408 = arith.mulf %397, %391 : vector<8x128xf32>
      %409 = arith.index_cast %c6_i32 : i32 to index
      %c0_136 = arith.constant 0 : index
      %c0_137 = arith.constant 0 : index
      %410 = vector.load %arg8[%409, %c0_136, %c0_137] : memref<8x8x128xf32, #tpu.memory_space<vmem>>, vector<1x8x128xf32>
      %411 = vector.shape_cast %410 : vector<1x8x128xf32> to vector<8x128xf32>
      %412 = vector.shape_cast %408 : vector<8x128xf32> to vector<1x8x128xf32>
      tpu.vector_store %arg8[%409, %c0_136, %c0_137], %412 {strides = array<i32>} : memref<8x8x128xf32, #tpu.memory_space<vmem>>, vector<1x8x128xf32>,
      %c7_i32 = arith.constant 7 : i32
      %c0_138 = arith.constant 0 : index
      %c0_139 = arith.constant 0 : index
      %413 = vector.load %arg10[%c0_138, %c0_139] : memref<8x128xf32, #tpu.memory_space<vmem>>, vector<8x128xf32>
      %c0_140 = arith.constant 0 : index
      %c0_141 = arith.constant 0 : index
      %414 = vector.load %arg11[%c0_140, %c0_141] : memref<8x128xf32, #tpu.memory_space<vmem>>, vector<8x128xf32>
      %c8_i32_142 = arith.constant 8 : i32
      %415 = arith.muli %c7_i32, %c8_i32_142 : i32
      %416 = tpu.assume_multiple %415, 8 : i32
      %417 = arith.index_cast %416 : i32 to index
      %c0_143 = arith.constant 0 : index
      %418 = vector.load %arg12[%417, %c0_143] : memref<64x512xf32, #tpu.memory_space<vmem>>, vector<8x512xf32>
      %419 = arith.truncf %413 : vector<8x128xf32> to vector<8x128xbf16>
      %cst_144 = arith.constant dense<0.000000e+00> : vector<8x512xf32>
      %420 = tpu.matmul %419, %23, %cst_144 {dimension_numbers = #tpu.dot_dimension_numbers<[1], [0], [0], [1], [0, 0, 1, 1], [], []>} : vector<8x128xbf16>, vector<128x512xbf16>, vector<8x512xf32> -> vector<8x512xf32>
      %421 = arith.addf %418, %420 : vector<8x512xf32>
      %422 = vector.extract_strided_slice %421 {offsets = [0, 0], sizes = [8, 128], strides = [1, 1]} : vector<8x512xf32> to vector<8x128xf32>
      %423 = arith.negf %422 : vector<8x128xf32>
      %424 = math.exp %423 : vector<8x128xf32>
      %cst_145 = arith.constant 1.000000e+00 : f32
      %425 = vector.broadcast %cst_145 : f32 to vector<8x128xf32>
      %426 = arith.addf %425, %424 : vector<8x128xf32>
      %427 = arith.divf %425, %426 : vector<8x128xf32>
      %428 = vector.extract_strided_slice %421 {offsets = [0, 128], sizes = [8, 128], strides = [1, 1]} : vector<8x512xf32> to vector<8x128xf32>
      %429 = arith.negf %428 : vector<8x128xf32>
      %430 = math.exp %429 : vector<8x128xf32>
      %cst_146 = arith.constant 1.000000e+00 : f32
      %431 = vector.broadcast %cst_146 : f32 to vector<8x128xf32>
      %432 = arith.addf %431, %430 : vector<8x128xf32>
      %433 = arith.divf %431, %432 : vector<8x128xf32>
      %434 = vector.extract_strided_slice %421 {offsets = [0, 256], sizes = [8, 128], strides = [1, 1]} : vector<8x512xf32> to vector<8x128xf32>
      %435 = math.tanh %434 : vector<8x128xf32>
      %436 = vector.extract_strided_slice %421 {offsets = [0, 384], sizes = [8, 128], strides = [1, 1]} : vector<8x512xf32> to vector<8x128xf32>
      %437 = arith.negf %436 : vector<8x128xf32>
      %438 = math.exp %437 : vector<8x128xf32>
      %cst_147 = arith.constant 1.000000e+00 : f32
      %439 = vector.broadcast %cst_147 : f32 to vector<8x128xf32>
      %440 = arith.addf %439, %438 : vector<8x128xf32>
      %441 = arith.divf %439, %440 : vector<8x128xf32>
      %442 = arith.mulf %433, %414 : vector<8x128xf32>
      %443 = arith.mulf %427, %435 : vector<8x128xf32>
      %444 = arith.addf %442, %443 : vector<8x128xf32>
      %445 = math.tanh %444 : vector<8x128xf32>
      %446 = arith.mulf %441, %445 : vector<8x128xf32>
      %447 = vector.broadcast %c7_i32 : i32 to vector<8x1xi32>
      %448 = arith.cmpi sgt, %27, %447 : vector<8x1xi32>
      %449 = arith.extui %448 : vector<8x1xi1> to vector<8x1xi32>
      %450 = arith.sitofp %449 : vector<8x1xi32> to vector<8x1xf32>
      %451 = vector.shape_cast %450 : vector<8x1xf32> to vector<8x1xf32>
      %452 = vector.broadcast %451 : vector<8x1xf32> to vector<8x128xf32>
      %cst_148 = arith.constant 1.000000e+00 : f32
      %453 = vector.broadcast %cst_148 : f32 to vector<8x128xf32>
      %454 = arith.subf %453, %452 : vector<8x128xf32>
      %455 = arith.mulf %452, %444 : vector<8x128xf32>
      %456 = arith.mulf %454, %414 : vector<8x128xf32>
      %457 = arith.addf %455, %456 : vector<8x128xf32>
      %c0_149 = arith.constant 0 : index
      %c0_150 = arith.constant 0 : index
      %458 = vector.load %arg11[%c0_149, %c0_150] : memref<8x128xf32, #tpu.memory_space<vmem>>, vector<8x128xf32>
      tpu.vector_store %arg11[%c0_149, %c0_150], %457 {strides = array<i32>} : memref<8x128xf32, #tpu.memory_space<vmem>>, vector<8x128xf32>,
      %459 = arith.mulf %452, %446 : vector<8x128xf32>
      %460 = arith.mulf %454, %413 : vector<8x128xf32>
      %461 = arith.addf %459, %460 : vector<8x128xf32>
      %c0_151 = arith.constant 0 : index
      %c0_152 = arith.constant 0 : index
      %462 = vector.load %arg10[%c0_151, %c0_152] : memref<8x128xf32, #tpu.memory_space<vmem>>, vector<8x128xf32>
      tpu.vector_store %arg10[%c0_151, %c0_152], %461 {strides = array<i32>} : memref<8x128xf32, #tpu.memory_space<vmem>>, vector<8x128xf32>,
      %463 = arith.mulf %452, %446 : vector<8x128xf32>
      %464 = arith.index_cast %c7_i32 : i32 to index
      %c0_153 = arith.constant 0 : index
      %c0_154 = arith.constant 0 : index
      %465 = vector.load %arg8[%464, %c0_153, %c0_154] : memref<8x8x128xf32, #tpu.memory_space<vmem>>, vector<1x8x128xf32>
      %466 = vector.shape_cast %465 : vector<1x8x128xf32> to vector<8x128xf32>
      %467 = vector.shape_cast %463 : vector<8x128xf32> to vector<1x8x128xf32>
      tpu.vector_store %arg8[%464, %c0_153, %c0_154], %467 {strides = array<i32>} : memref<8x8x128xf32, #tpu.memory_space<vmem>>, vector<1x8x128xf32>,
      %c8_i32_155 = arith.constant 8 : i32
    } else {
    }
    %c0_i32_4 = arith.constant 0 : i32
    %12 = arith.cmpi eq, %arg1, %c0_i32_4 : i32
    %13 = arith.extui %12 : i1 to i32
    %c0_i32_5 = arith.constant 0 : i32
    %14 = arith.cmpi ne, %13, %c0_i32_5 : i32
    scf.if %14 {
      %c0 = arith.constant 0 : index
      %c0_6 = arith.constant 0 : index
      %15 = vector.load %arg11[%c0, %c0_6] : memref<8x128xf32, #tpu.memory_space<vmem>>, vector<8x128xf32>
      %c0_7 = arith.constant 0 : index
      %c0_8 = arith.constant 0 : index
      %c0_9 = arith.constant 0 : index
      %16 = vector.load %arg9[%c0_7, %c0_8, %c0_9] : memref<1x8x128xf32, #tpu.memory_space<vmem>>, vector<1x8x128xf32>
      %17 = vector.shape_cast %16 : vector<1x8x128xf32> to vector<8x128xf32>
      %18 = vector.shape_cast %15 : vector<8x128xf32> to vector<1x8x128xf32>
      tpu.vector_store %arg9[%c0_7, %c0_8, %c0_9], %18 {strides = array<i32>} : memref<1x8x128xf32, #tpu.memory_space<vmem>>, vector<1x8x128xf32>,
    } else {
    }
    return
  }
  func.func @transform_0(%arg0: i32, %arg1: i32, %arg2: memref<1x1xi32, #tpu.memory_space<smem>>) -> (i32, i32) {
    %c0_i32 = arith.constant 0 : i32
    %c0_i32_0 = arith.constant 0 : i32
    return %arg0, %c0_i32 : i32, i32
  }
  func.func @transform_1(%arg0: i32, %arg1: i32, %arg2: memref<1x1xi32, #tpu.memory_space<smem>>) -> (i32, i32, i32) {
    %c0_i32 = arith.constant 0 : i32
    %c0_i32_0 = arith.constant 0 : i32
    return %arg1, %arg0, %c0_i32 : i32, i32, i32
  }
  func.func @transform_2(%arg0: i32, %arg1: i32, %arg2: memref<1x1xi32, #tpu.memory_space<smem>>) -> (i32, i32) {
    %c0_i32 = arith.constant 0 : i32
    %c0_i32_0 = arith.constant 0 : i32
    %c0_i32_1 = arith.constant 0 : i32
    return %c0_i32, %c0_i32_0 : i32, i32
  }
  func.func @transform_3(%arg0: i32, %arg1: i32, %arg2: memref<1x1xi32, #tpu.memory_space<smem>>) -> (i32, i32) {
    %c0_i32 = arith.constant 0 : i32
    %c0_i32_0 = arith.constant 0 : i32
    %c0_i32_1 = arith.constant 0 : i32
    return %c0_i32, %c0_i32_0 : i32, i32
  }
  func.func @transform_4(%arg0: i32, %arg1: i32, %arg2: memref<1x1xi32, #tpu.memory_space<smem>>) -> (i32, i32) {
    %c0_i32 = arith.constant 0 : i32
    %c0_i32_0 = arith.constant 0 : i32
    %c0_i32_1 = arith.constant 0 : i32
    return %c0_i32, %c0_i32_0 : i32, i32
  }
  func.func @transform_5(%arg0: i32, %arg1: i32, %arg2: memref<1x1xi32, #tpu.memory_space<smem>>) -> (i32, i32, i32) {
    %c0_i32 = arith.constant 0 : i32
    %c0_i32_0 = arith.constant 0 : i32
    return %arg1, %arg0, %c0_i32 : i32, i32, i32
  }
  func.func @transform_6(%arg0: i32, %arg1: i32, %arg2: memref<1x1xi32, #tpu.memory_space<smem>>) -> (i32, i32, i32) {
    %c0_i32 = arith.constant 0 : i32
    %c0_i32_0 = arith.constant 0 : i32
    %c0_i32_1 = arith.constant 0 : i32
    return %c0_i32, %arg0, %c0_i32_0 : i32, i32, i32
  }
}

</mosaic_0001>

<llo_original>
// kernel: tpu_custom_call.1
$region0: #{tpu_custom_call.1}
  #allocation0 [shape = 'u32[]', space=smem, size = 0x4, offset = 0x4, fixed_abs, tag = 'smem constant byte address 0x4 - core index']
  #allocation1 [shape = 'u32[144,128]{1,0:T(1,128)}', space=vmem, size = 0x12000, scoped, tag = 'internal scratch']
  #allocation2 [shape = 'f32[8,128]{1,0:T(8,128)}', space=vmem, size = 0x1000, scoped, tag = 'scratch operand']
  #allocation3 [shape = 'f32[8,128]{1,0:T(8,128)}', space=vmem, size = 0x1000, scoped, tag = 'scratch operand']
  #allocation4 [shape = 'f32[64,512]{1,0:T(8,128)}', space=vmem, size = 0x20000, scoped, tag = 'scratch operand']
  #allocation5 [shape = 's32[1]{0}', space=sflag, size = 0x4, scoped, tag = 'scoped memory for tpu_custom_call.1']
  #allocation6 [shape = 's32[1,1]{1,0:T(1,128)S(6)}', space=smem, size = 0x200, scoped, tag = 'prefetched SMEM operand 0']
  %s0 = inlined_call_operand.<no memory space> [shape: s32[1,1], index: 0, kind: input, shape index: {}]
  %s1 = inlined_call_operand.vmem [shape: s32[8,1], index: 1, kind: input, shape index: {}]
  %s2 = inlined_call_operand.hbm [shape: bf16[8,8,16], index: 2, kind: input, shape index: {}]
  %s3 = inlined_call_operand.hbm [shape: bf16[16,512], index: 3, kind: input, shape index: {}]
  %s4 = inlined_call_operand.hbm [shape: bf16[128,512], index: 4, kind: input, shape index: {}]
  %s5 = inlined_call_operand.vmem [shape: f32[1,512], index: 5, kind: input, shape index: {}]
  %s6 = inlined_call_operand.hbm [shape: f32[8,8,128], index: 6, kind: output, shape index: {0}]
  %s7 = inlined_call_operand.hbm [shape: f32[1,8,128], index: 7, kind: output, shape index: {1}]
  %8 = xla_tuple %s6, %s7
  %s9 = sld [smem:[#allocation0]]
  $region66: #{tpu_custom_call.1} parent=0
    _
  %s11 = ssub.s32 1, %s9
  %s12 = scalar_select 0, %s11, %s9
  %13 = sst [smem:[#allocation6]] %s0
  $region1: #{tpu_custom_call.1} parent=0
    #allocation7 [shape = 'u8[16384]{0}', space=vmem, size = 0x4000, scoped, tag = 'input window, operand 2, single buffered']
    #allocation8 [shape = 's32[1]{0}', space=sflag, size = 0x4, scoped, tag = 'scoped memory for tpu_custom_call.1']
    #allocation9 [shape = 's32[1]{0}', space=sflag, size = 0x4, scoped, tag = 'scoped memory for tpu_custom_call.1']
    #allocation10 [shape = 'u8[16384]{0}', space=vmem, size = 0x4000, scoped, tag = 'input window, operand 3, single buffered']
    #allocation11 [shape = 's32[1]{0}', space=sflag, size = 0x4, scoped, tag = 'scoped memory for tpu_custom_call.1']
    #allocation12 [shape = 'u8[131072]{0}', space=vmem, size = 0x20000, scoped, tag = 'input window, operand 4, single buffered']
    #allocation13 [shape = 'u8[32768]{0}', space=vmem, size = 0x8000, scoped, tag = 'output window, operand 0, single buffered']
    #allocation14 [shape = 'u8[4096]{0}', space=vmem, size = 0x1000, scoped, tag = 'output window, operand 1, single buffered']
    #allocation15 [shape = 's32[1]{0}', space=sflag, size = 0x4, scoped, tag = 'scoped memory for tpu_custom_call.1']
    %14 = vsyncpa [#allocation8], 0
    %15 = vsyncpa [#allocation11], 0
    %16 = vsyncpa [#allocation9], 0
    %17 = vsyncpa [#allocation15], 0
    // Predicated region
    $region2: #{tpu_custom_call.1} parent=1 // pred_check
      _
    $region3: #{tpu_custom_call.1} parent=1 // pred_check_branch
      %19 = sbr.rel (0) target = $region5
    $region4: #{tpu_custom_call.1} parent=1 // pred_region
      _
    $region5: #{tpu_custom_call.1} parent=1 // pred_fallthru
      _
    // Predicated region
    $region6: #{tpu_custom_call.1} parent=1 // pred_check
      _
    $region7: #{tpu_custom_call.1} parent=1 // pred_check_branch
      %21 = sbr.rel (0) target = $region9
    $region8: #{tpu_custom_call.1} parent=1 // pred_region
      %s23 = ssub.s32 512, 512
      %24 = vsyncadd [#allocation8], %s23
      %s25 = sshll.u32 [#allocation7], 4
      %s26 = int_to_ptr.vmem [resolvable:$true] %s25
      %31 = dma.hbm_to_vmem [thread:$0]  %s2, 512, %s26, [#allocation8], 64, 64, 4
    $region9: #{tpu_custom_call.1} parent=1 // pred_fallthru
      _
    // Predicated region
    $region10: #{tpu_custom_call.1} parent=1 // pred_check
      _
    $region11: #{tpu_custom_call.1} parent=1 // pred_check_branch
      %33 = sbr.rel (0) target = $region13
    $region12: #{tpu_custom_call.1} parent=1 // pred_region
      %s35 = ssub.s32 512, 512
      %36 = vsyncadd [#allocation11], %s35
      %s37 = sshll.u32 [#allocation10], 4
      %s38 = int_to_ptr.vmem [resolvable:$true] %s37
      %43 = dma.hbm_to_vmem [thread:$0]  %s3, 512, %s38, [#allocation11], 256, 256, 16
    $region13: #{tpu_custom_call.1} parent=1 // pred_fallthru
      _
    // Predicated region
    $region14: #{tpu_custom_call.1} parent=1 // pred_check
      _
    $region15: #{tpu_custom_call.1} parent=1 // pred_check_branch
      %45 = sbr.rel (0) target = $region17
    $region16: #{tpu_custom_call.1} parent=1 // pred_region
      %s47 = ssub.s32 4096, 4096
      %48 = vsyncadd [#allocation11], %s47
      %s49 = sshll.u32 [#allocation12], 4
      %s50 = int_to_ptr.vmem [resolvable:$true] %s49
      %55 = dma.hbm_to_vmem [thread:$0]  %s4, 4096, %s50, [#allocation11], 256, 256, 16
    $region17: #{tpu_custom_call.1} parent=1 // pred_fallthru
      _
    // Predicated region
    $region18: #{tpu_custom_call.1} parent=1 // pred_check
      _
    $region19: #{tpu_custom_call.1} parent=1 // pred_check_branch
      %57 = sbr.rel (0) target = $region21
    $region20: #{tpu_custom_call.1} parent=1 // pred_region
      _
    $region21: #{tpu_custom_call.1} parent=1 // pred_fallthru
      _
    // Predicated region
    $region22: #{tpu_custom_call.1} parent=1 // pred_check
      _
    $region23: #{tpu_custom_call.1} parent=1 // pred_check_branch
      %59 = sbr.rel (0) target = $region25
    $region24: #{tpu_custom_call.1} parent=1 // pred_region
      %60 = dma.done [#allocation8], 512
    $region25: #{tpu_custom_call.1} parent=1 // pred_fallthru
      _
    // Predicated region
    $region26: #{tpu_custom_call.1} parent=1 // pred_check
      _
    $region27: #{tpu_custom_call.1} parent=1 // pred_check_branch
      %62 = sbr.rel (0) target = $region29
    $region28: #{tpu_custom_call.1} parent=1 // pred_region
      %63 = dma.done [#allocation11], 512
    $region29: #{tpu_custom_call.1} parent=1 // pred_fallthru
      _
    // Predicated region
    $region30: #{tpu_custom_call.1} parent=1 // pred_check
      _
    $region31: #{tpu_custom_call.1} parent=1 // pred_check_branch
      %65 = sbr.rel (0) target = $region33
    $region32: #{tpu_custom_call.1} parent=1 // pred_region
      %66 = dma.done [#allocation11], 4096
    $region33: #{tpu_custom_call.1} parent=1 // pred_fallthru
      _
    %p68 = scmp.eq.s32.totalorder 0, 0
    // Predicated region
    $region34: #{tpu_custom_call.1} parent=1 // pred_check
      %p69 = pneg %p68
    $region35: #{tpu_custom_call.1} parent=1 // pred_check_branch
      %71 = sbr.rel (%p69) target = $region37
    $region36: #{tpu_custom_call.1} parent=1 // pred_region
      %72 = vst [vmem:[#allocation2] sm:$0xff] 0.0
      %73 = vst [vmem:[#allocation3] sm:$0xff] 0.0
    $region37: #{tpu_custom_call.1} parent=1 // pred_fallthru
      _
    %s74 = sadd.s32 0, 0
    %s75 = smul.u32 %s74, 128
    %s76 = sadd.s32 %s75, 0
    %s77 = sld [smem:[#allocation6 + %s76]]
    %p78 = scmp.gt.s32.totalorder %s77, 0
    %p79 = scmp.le.s32.totalorder %s77, 0
    // Predicated region
    $region38: #{tpu_custom_call.1} parent=1 // pred_check
      %p80 = pneg %p79
    $region39: #{tpu_custom_call.1} parent=1 // pred_check_branch
      %82 = sbr.rel (%p80) target = $region41
    $region40: #{tpu_custom_call.1} parent=1 // pred_region
      %83 = vst [vmem:[#allocation13] sm:$0xff] 0.0
      %84 = vst [vmem:[#allocation13 + $0x8] sm:$0xff] 0.0
      %85 = vst [vmem:[#allocation13 + $0x10] sm:$0xff] 0.0
      %86 = vst [vmem:[#allocation13 + $0x18] sm:$0xff] 0.0
      %87 = vst [vmem:[#allocation13 + $0x20] sm:$0xff] 0.0
      %88 = vst [vmem:[#allocation13 + $0x28] sm:$0xff] 0.0
      %89 = vst [vmem:[#allocation13 + $0x30] sm:$0xff] 0.0
      %90 = vst [vmem:[#allocation13 + $0x38] sm:$0xff] 0.0
    $region41: #{tpu_custom_call.1} parent=1 // pred_fallthru
      _
    // Predicated region
    $region42: #{tpu_custom_call.1} parent=1 // pred_check
      %p91 = pneg %p78
    $region43: #{tpu_custom_call.1} parent=1 // pred_check_branch
      %93 = sbr.rel (%p91) target = $region45
    $region44: #{tpu_custom_call.1} parent=1 // pred_region
      %v94 = vld [vmem:[#allocation7] sm:$0xf]
      %v95 = vld [vmem:[#allocation7 + $0x4] sm:$0xf]
      %v96 = vld [vmem:[#allocation7 + $0x8] sm:$0xf]
      %v97 = vld [vmem:[#allocation7 + $0xc] sm:$0xf]
      %v98 = vld [vmem:[#allocation7 + $0x10] sm:$0xf]
      %v99 = vld [vmem:[#allocation7 + $0x14] sm:$0xf]
      %v100 = vld [vmem:[#allocation7 + $0x18] sm:$0xf]
      %v101 = vld [vmem:[#allocation7 + $0x1c] sm:$0xf]
      %v102 = vld [vmem:[#allocation10] sm:$0xff]
      %v103 = vld [vmem:[#allocation10 + $0x8] sm:$0xff]
      %v104 = vld [vmem:[#allocation10 + $0x10] sm:$0xff]
      %v105 = vld [vmem:[#allocation10 + $0x18] sm:$0xff]
      %v106 = vld [vmem:[%s5] sm:$0xf]
      %v108 = vlaneseq
      %v109 = vshrl.u32 %v108, 7
      %v110 = vsub.s32 0, %v109
      %v111 = vrot.slane %v106, %v110
      %v112 = vlaneseq
      %v113 = vshrl.u32 %v112, 7
      %v114 = vsub.s32 1, %v113
      %v115 = vrot.slane %v106, %v114
      %v116 = vlaneseq
      %v117 = vshrl.u32 %v116, 7
      %v118 = vsub.s32 2, %v117
      %v119 = vrot.slane %v106, %v118
      %v120 = vlaneseq
      %v121 = vshrl.u32 %v120, 7
      %v122 = vsub.s32 3, %v121
      %v123 = vrot.slane %v106, %v122
      %v136 = vunpack.c.l.b16 %v94
      %v137 = vunpack.c.l.b16 %v95
      %v138 = vunpack.c.l.b16 %v96
      %v139 = vunpack.c.l.b16 %v97
      %v140 = vunpack.c.l.b16 %v98
      %v141 = vunpack.c.l.b16 %v99
      %v142 = vunpack.c.l.b16 %v100
      %v143 = vunpack.c.l.b16 %v101
      %v144 = vpack.c.b16 %v137, %v136
      %v145 = vpack.c.b16 %v139, %v138
      %v146 = vpack.c.b16 %v141, %v140
      %v147 = vpack.c.b16 %v143, %v142
      %v152 = vunpack.c.l.b16 %v102
      %v153 = vunpack.c.h.b16 %v102
      %v154 = vunpack.c.l.b16 %v103
      %v155 = vunpack.c.h.b16 %v103
      %v156 = vunpack.c.l.b16 %v104
      %v157 = vunpack.c.h.b16 %v104
      %v158 = vunpack.c.l.b16 %v105
      %v159 = vunpack.c.h.b16 %v105
      %v160 = vpack.c.b16 %v156, %v152
      %v161 = vpack.c.b16 %v157, %v153
      %v162 = vpack.c.b16 %v158, %v154
      %v163 = vpack.c.b16 %v159, %v155
      %vm168 = vcmask 130048
      %v170 = vsel %vm168, %v144, 0
      %v173 = vsel %vm168, %v145, 0
      %v176 = vsel %vm168, %v146, 0
      %v179 = vsel %vm168, %v147, 0
      %181 = vmatprep.subr.bf16.mxu0 0
      %182 = vmatpush1.bf16.msra.mxu0 0
      %183 = vmatprep.subr.bf16.mxu0 0
      %184 = vmatpush1.bf16.msra.mxu0 0
      %185 = vmatprep.subr.bf16.mxu0 0
      %186 = vmatpush1.bf16.msra.mxu0 0
      %187 = vmatprep.subr.bf16.mxu0 0
      %188 = vmatpush1.bf16.msra.mxu0 0
      %189 = vmatprep.subr.bf16.mxu0 0
      %190 = vmatpush1.bf16.msra.mxu0 0
      %191 = vmatprep.subr.bf16.mxu0 0
      %192 = vmatpush1.bf16.msra.mxu0 0
      %193 = vmatprep.subr.bf16.mxu0 0
      %194 = vmatpush1.bf16.msra.mxu0 0
      %195 = vmatprep.subr.bf16.mxu0 %v161
      %196 = vmatpush1.bf16.msra.mxu0 %v160
      %197 = vmatprep.subr.bf16.mxu0 0
      %198 = vmatpush2.bf16.msra.mxu0 0
      %199 = vmatprep.subr.bf16.mxu0 0
      %200 = vmatpush2.bf16.msra.mxu0 0
      %201 = vmatprep.subr.bf16.mxu0 0
      %202 = vmatpush2.bf16.msra.mxu0 0
      %203 = vmatprep.subr.bf16.mxu0 0
      %204 = vmatpush2.bf16.msra.mxu0 0
      %205 = vmatprep.subr.bf16.mxu0 0
      %206 = vmatpush2.bf16.msra.mxu0 0
      %207 = vmatprep.subr.bf16.mxu0 0
      %208 = vmatpush2.bf16.msra.mxu0 0
      %209 = vmatprep.subr.bf16.mxu0 0
      %210 = vmatpush2.bf16.msra.mxu0 0
      %211 = vmatprep.subr.bf16.mxu0 0
      %212 = vmatpush2.bf16.msra.mxu0 0
      %213 = vmatprep.mubr.bf16.mxu0 0
      %214 = vmatmul.mubr.bf16.gmra.mxu0 %v170
      %v215 = vpop.f32.mrf.mxu0
      %v216 = vadd.f32 %v111, %v215
      %v217 = vpop.f32.mrf.mxu0
      %v218 = vadd.f32 %v115, %v217
      %v219 = vpop.f32.mrf.mxu0
      %v220 = vadd.f32 %v111, %v219
      %v221 = vpop.f32.mrf.mxu0
      %v222 = vadd.f32 %v115, %v221
      %223 = vmatprep.mubr.bf16.mxu0 0
      %224 = vmatmul.mubr.bf16.gmra.mxu0 %v173
      %v225 = vpop.f32.mrf.mxu0
      %v226 = vadd.f32 %v111, %v225
      %v227 = vpop.f32.mrf.mxu0
      %v228 = vadd.f32 %v115, %v227
      %v229 = vpop.f32.mrf.mxu0
      %v230 = vadd.f32 %v111, %v229
      %v231 = vpop.f32.mrf.mxu0
      %v232 = vadd.f32 %v115, %v231
      %233 = vmatprep.mubr.bf16.mxu0 0
      %234 = vmatmul.mubr.bf16.gmra.mxu0 %v176
      %v235 = vpop.f32.mrf.mxu0
      %v236 = vadd.f32 %v111, %v235
      %v237 = vpop.f32.mrf.mxu0
      %v238 = vadd.f32 %v115, %v237
      %v239 = vpop.f32.mrf.mxu0
      %v240 = vadd.f32 %v111, %v239
      %v241 = vpop.f32.mrf.mxu0
      %v242 = vadd.f32 %v115, %v241
      %243 = vmatprep.mubr.bf16.mxu0 0
      %244 = vmatmul.mubr.bf16.gmra.mxu0 %v179
      %v245 = vpop.f32.mrf.mxu0
      %v246 = vadd.f32 %v111, %v245
      %v247 = vpop.f32.mrf.mxu0
      %v248 = vadd.f32 %v115, %v247
      %v249 = vpop.f32.mrf.mxu0
      %v250 = vadd.f32 %v111, %v249
      %v251 = vpop.f32.mrf.mxu0
      %v252 = vadd.f32 %v115, %v251
      %253 = vdwg.mxu0
      %254 = vmatprep.subr.bf16.mxu0 0
      %255 = vmatpush1.bf16.msra.mxu0 0
      %256 = vmatprep.subr.bf16.mxu0 0
      %257 = vmatpush1.bf16.msra.mxu0 0
      %258 = vmatprep.subr.bf16.mxu0 0
      %259 = vmatpush1.bf16.msra.mxu0 0
      %260 = vmatprep.subr.bf16.mxu0 0
      %261 = vmatpush1.bf16.msra.mxu0 0
      %262 = vmatprep.subr.bf16.mxu0 0
      %263 = vmatpush1.bf16.msra.mxu0 0
      %264 = vmatprep.subr.bf16.mxu0 0
      %265 = vmatpush1.bf16.msra.mxu0 0
      %266 = vmatprep.subr.bf16.mxu0 0
      %267 = vmatpush1.bf16.msra.mxu0 0
      %268 = vmatprep.subr.bf16.mxu0 %v163
      %269 = vmatpush1.bf16.msra.mxu0 %v162
      %270 = vmatprep.subr.bf16.mxu0 0
      %271 = vmatpush2.bf16.msra.mxu0 0
      %272 = vmatprep.subr.bf16.mxu0 0
      %273 = vmatpush2.bf16.msra.mxu0 0
      %274 = vmatprep.subr.bf16.mxu0 0
      %275 = vmatpush2.bf16.msra.mxu0 0
      %276 = vmatprep.subr.bf16.mxu0 0
      %277 = vmatpush2.bf16.msra.mxu0 0
      %278 = vmatprep.subr.bf16.mxu0 0
      %279 = vmatpush2.bf16.msra.mxu0 0
      %280 = vmatprep.subr.bf16.mxu0 0
      %281 = vmatpush2.bf16.msra.mxu0 0
      %282 = vmatprep.subr.bf16.mxu0 0
      %283 = vmatpush2.bf16.msra.mxu0 0
      %284 = vmatprep.subr.bf16.mxu0 0
      %285 = vmatpush2.bf16.msra.mxu0 0
      %286 = vmatprep.mubr.bf16.mxu0 0
      %287 = vmatmul.mubr.bf16.gmra.mxu0 %v170
      %v288 = vpop.f32.mrf.mxu0
      %v289 = vadd.f32 %v119, %v288
      %v290 = vpop.f32.mrf.mxu0
      %v291 = vadd.f32 %v123, %v290
      %v292 = vpop.f32.mrf.mxu0
      %v293 = vadd.f32 %v119, %v292
      %v294 = vpop.f32.mrf.mxu0
      %v295 = vadd.f32 %v123, %v294
      %296 = vmatprep.mubr.bf16.mxu0 0
      %297 = vmatmul.mubr.bf16.gmra.mxu0 %v173
      %v298 = vpop.f32.mrf.mxu0
      %v299 = vadd.f32 %v119, %v298
      %v300 = vpop.f32.mrf.mxu0
      %v301 = vadd.f32 %v123, %v300
      %v302 = vpop.f32.mrf.mxu0
      %v303 = vadd.f32 %v119, %v302
      %v304 = vpop.f32.mrf.mxu0
      %v305 = vadd.f32 %v123, %v304
      %306 = vmatprep.mubr.bf16.mxu0 0
      %307 = vmatmul.mubr.bf16.gmra.mxu0 %v176
      %v308 = vpop.f32.mrf.mxu0
      %v309 = vadd.f32 %v119, %v308
      %v310 = vpop.f32.mrf.mxu0
      %v311 = vadd.f32 %v123, %v310
      %v312 = vpop.f32.mrf.mxu0
      %v313 = vadd.f32 %v119, %v312
      %v314 = vpop.f32.mrf.mxu0
      %v315 = vadd.f32 %v123, %v314
      %316 = vmatprep.mubr.bf16.mxu0 0
      %317 = vmatmul.mubr.bf16.gmra.mxu0 %v179
      %v318 = vpop.f32.mrf.mxu0
      %v319 = vadd.f32 %v119, %v318
      %v320 = vpop.f32.mrf.mxu0
      %v321 = vadd.f32 %v123, %v320
      %v322 = vpop.f32.mrf.mxu0
      %v323 = vadd.f32 %v119, %v322
      %v324 = vpop.f32.mrf.mxu0
      %v325 = vadd.f32 %v123, %v324
      %326 = vdwg.mxu0
      %327 = vst [vmem:[#allocation4] sm:$0xff] %v216
      %328 = vst [vmem:[#allocation4 + $0x8] sm:$0xff] %v218
      %329 = vst [vmem:[#allocation4 + $0x10] sm:$0xff] %v289
      %330 = vst [vmem:[#allocation4 + $0x18] sm:$0xff] %v291
      %331 = vst [vmem:[#allocation4 + $0x20] sm:$0xff] %v220
      %332 = vst [vmem:[#allocation4 + $0x28] sm:$0xff] %v222
      %333 = vst [vmem:[#allocation4 + $0x30] sm:$0xff] %v293
      %334 = vst [vmem:[#allocation4 + $0x38] sm:$0xff] %v295
      %335 = vst [vmem:[#allocation4 + $0x40] sm:$0xff] %v226
      %336 = vst [vmem:[#allocation4 + $0x48] sm:$0xff] %v228
      %337 = vst [vmem:[#allocation4 + $0x50] sm:$0xff] %v299
      %338 = vst [vmem:[#allocation4 + $0x58] sm:$0xff] %v301
      %339 = vst [vmem:[#allocation4 + $0x60] sm:$0xff] %v230
      %340 = vst [vmem:[#allocation4 + $0x68] sm:$0xff] %v232
      %341 = vst [vmem:[#allocation4 + $0x70] sm:$0xff] %v303
      %342 = vst [vmem:[#allocation4 + $0x78] sm:$0xff] %v305
      %343 = vst [vmem:[#allocation4 + $0x80] sm:$0xff] %v236
      %344 = vst [vmem:[#allocation4 + $0x88] sm:$0xff] %v238
      %345 = vst [vmem:[#allocation4 + $0x90] sm:$0xff] %v309
      %346 = vst [vmem:[#allocation4 + $0x98] sm:$0xff] %v311
      %347 = vst [vmem:[#allocation4 + $0xa0] sm:$0xff] %v240
      %348 = vst [vmem:[#allocation4 + $0xa8] sm:$0xff] %v242
      %349 = vst [vmem:[#allocation4 + $0xb0] sm:$0xff] %v313
      %350 = vst [vmem:[#allocation4 + $0xb8] sm:$0xff] %v315
      %351 = vst [vmem:[#allocation4 + $0xc0] sm:$0xff] %v246
      %352 = vst [vmem:[#allocation4 + $0xc8] sm:$0xff] %v248
      %353 = vst [vmem:[#allocation4 + $0xd0] sm:$0xff] %v319
      %354 = vst [vmem:[#allocation4 + $0xd8] sm:$0xff] %v321
      %355 = vst [vmem:[#allocation4 + $0xe0] sm:$0xff] %v250
      %356 = vst [vmem:[#allocation4 + $0xe8] sm:$0xff] %v252
      %357 = vst [vmem:[#allocation4 + $0xf0] sm:$0xff] %v323
      %358 = vst [vmem:[#allocation4 + $0xf8] sm:$0xff] %v325
      %v359 = vld [vmem:[#allocation12] sm:$0xff]
      %v360 = vld [vmem:[#allocation12 + $0x8] sm:$0xff]
      %v361 = vld [vmem:[#allocation12 + $0x10] sm:$0xff]
      %v362 = vld [vmem:[#allocation12 + $0x18] sm:$0xff]
      %v363 = vld [vmem:[#allocation12 + $0x20] sm:$0xff]
      %v364 = vld [vmem:[#allocation12 + $0x28] sm:$0xff]
      %v365 = vld [vmem:[#allocation12 + $0x30] sm:$0xff]
      %v366 = vld [vmem:[#allocation12 + $0x38] sm:$0xff]
      %v367 = vld [vmem:[#allocation12 + $0x40] sm:$0xff]
      %v368 = vld [vmem:[#allocation12 + $0x48] sm:$0xff]
      %v369 = vld [vmem:[#allocation12 + $0x50] sm:$0xff]
      %v370 = vld [vmem:[#allocation12 + $0x58] sm:$0xff]
      %v371 = vld [vmem:[#allocation12 + $0x60] sm:$0xff]
      %v372 = vld [vmem:[#allocation12 + $0x68] sm:$0xff]
      %v373 = vld [vmem:[#allocation12 + $0x70] sm:$0xff]
      %v374 = vld [vmem:[#allocation12 + $0x78] sm:$0xff]
      %v375 = vld [vmem:[#allocation12 + $0x80] sm:$0xff]
      %v376 = vld [vmem:[#allocation12 + $0x88] sm:$0xff]
      %v377 = vld [vmem:[#allocation12 + $0x90] sm:$0xff]
      %v378 = vld [vmem:[#allocation12 + $0x98] sm:$0xff]
      %v379 = vld [vmem:[#allocation12 + $0xa0] sm:$0xff]
      %v380 = vld [vmem:[#allocation12 + $0xa8] sm:$0xff]
      %v381 = vld [vmem:[#allocation12 + $0xb0] sm:$0xff]
      %v382 = vld [vmem:[#allocation12 + $0xb8] sm:$0xff]
      %v383 = vld [vmem:[#allocation12 + $0xc0] sm:$0xff]
      %v384 = vld [vmem:[#allocation12 + $0xc8] sm:$0xff]
      %v385 = vld [vmem:[#allocation12 + $0xd0] sm:$0xff]
      %v386 = vld [vmem:[#allocation12 + $0xd8] sm:$0xff]
      %v387 = vld [vmem:[#allocation12 + $0xe0] sm:$0xff]
      %v388 = vld [vmem:[#allocation12 + $0xe8] sm:$0xff]
      %v389 = vld [vmem:[#allocation12 + $0xf0] sm:$0xff]
      %v390 = vld [vmem:[#allocation12 + $0xf8] sm:$0xff]
      %v391 = vld [vmem:[%s1] sm:$0xff]
      %s392 = smul.u32 0, 8
      %v393 = vstv %s392
      %v394 = vsub.s32 %v391, %v393
      %v395 = vld [vmem:[#allocation2] sm:$0xff]
      %v396 = vld [vmem:[#allocation3] sm:$0xff]
      %s397 = smul.u32 0, 4
      %s398 = smul.addr %s397, 8
      %s399 = scalar_lea.vmem [#allocation4], %s398
      %v400 = vld [vmem:[%s399] sm:$0xff]
      %v401 = vld [vmem:[%s399 + $0x8] sm:$0xff]
      %v402 = vld [vmem:[%s399 + $0x10] sm:$0xff]
      %v403 = vld [vmem:[%s399 + $0x18] sm:$0xff]
      %v404 = vpack.c.bf16 %v395, %v395
      %v437 = vunpack.c.l.b16 %v359
      %v438 = vunpack.c.h.b16 %v359
      %v439 = vunpack.c.l.b16 %v360
      %v440 = vunpack.c.h.b16 %v360
      %v441 = vunpack.c.l.b16 %v361
      %v442 = vunpack.c.h.b16 %v361
      %v443 = vunpack.c.l.b16 %v362
      %v444 = vunpack.c.h.b16 %v362
      %v445 = vunpack.c.l.b16 %v363
      %v446 = vunpack.c.h.b16 %v363
      %v447 = vunpack.c.l.b16 %v364
      %v448 = vunpack.c.h.b16 %v364
      %v449 = vunpack.c.l.b16 %v365
      %v450 = vunpack.c.h.b16 %v365
      %v451 = vunpack.c.l.b16 %v366
      %v452 = vunpack.c.h.b16 %v366
      %v453 = vunpack.c.l.b16 %v367
      %v454 = vunpack.c.h.b16 %v367
      %v455 = vunpack.c.l.b16 %v368
      %v456 = vunpack.c.h.b16 %v368
      %v457 = vunpack.c.l.b16 %v369
      %v458 = vunpack.c.h.b16 %v369
      %v459 = vunpack.c.l.b16 %v370
      %v460 = vunpack.c.h.b16 %v370
      %v461 = vunpack.c.l.b16 %v371
      %v462 = vunpack.c.h.b16 %v371
      %v463 = vunpack.c.l.b16 %v372
      %v464 = vunpack.c.h.b16 %v372
      %v465 = vunpack.c.l.b16 %v373
      %v466 = vunpack.c.h.b16 %v373
      %v467 = vunpack.c.l.b16 %v374
      %v468 = vunpack.c.h.b16 %v374
      %v469 = vunpack.c.l.b16 %v375
      %v470 = vunpack.c.h.b16 %v375
      %v471 = vunpack.c.l.b16 %v376
      %v472 = vunpack.c.h.b16 %v376
      %v473 = vunpack.c.l.b16 %v377
      %v474 = vunpack.c.h.b16 %v377
      %v475 = vunpack.c.l.b16 %v378
      %v476 = vunpack.c.h.b16 %v378
      %v477 = vunpack.c.l.b16 %v379
      %v478 = vunpack.c.h.b16 %v379
      %v479 = vunpack.c.l.b16 %v380
      %v480 = vunpack.c.h.b16 %v380
      %v481 = vunpack.c.l.b16 %v381
      %v482 = vunpack.c.h.b16 %v381
      %v483 = vunpack.c.l.b16 %v382
      %v484 = vunpack.c.h.b16 %v382
      %v485 = vunpack.c.l.b16 %v383
      %v486 = vunpack.c.h.b16 %v383
      %v487 = vunpack.c.l.b16 %v384
      %v488 = vunpack.c.h.b16 %v384
      %v489 = vunpack.c.l.b16 %v385
      %v490 = vunpack.c.h.b16 %v385
      %v491 = vunpack.c.l.b16 %v386
      %v492 = vunpack.c.h.b16 %v386
      %v493 = vunpack.c.l.b16 %v387
      %v494 = vunpack.c.h.b16 %v387
      %v495 = vunpack.c.l.b16 %v388
      %v496 = vunpack.c.h.b16 %v388
      %v497 = vunpack.c.l.b16 %v389
      %v498 = vunpack.c.h.b16 %v389
      %v499 = vunpack.c.l.b16 %v390
      %v500 = vunpack.c.h.b16 %v390
      %v501 = vpack.c.b16 %v441, %v437
      %v502 = vpack.c.b16 %v442, %v438
      %v503 = vpack.c.b16 %v443, %v439
      %v504 = vpack.c.b16 %v444, %v440
      %v505 = vpack.c.b16 %v449, %v445
      %v506 = vpack.c.b16 %v450, %v446
      %v507 = vpack.c.b16 %v451, %v447
      %v508 = vpack.c.b16 %v452, %v448
      %v509 = vpack.c.b16 %v457, %v453
      %v510 = vpack.c.b16 %v458, %v454
      %v511 = vpack.c.b16 %v459, %v455
      %v512 = vpack.c.b16 %v460, %v456
      %v513 = vpack.c.b16 %v465, %v461
      %v514 = vpack.c.b16 %v466, %v462
      %v515 = vpack.c.b16 %v467, %v463
      %v516 = vpack.c.b16 %v468, %v464
      %v517 = vpack.c.b16 %v473, %v469
      %v518 = vpack.c.b16 %v474, %v470
      %v519 = vpack.c.b16 %v475, %v471
      %v520 = vpack.c.b16 %v476, %v472
      %v521 = vpack.c.b16 %v481, %v477
      %v522 = vpack.c.b16 %v482, %v478
      %v523 = vpack.c.b16 %v483, %v479
      %v524 = vpack.c.b16 %v484, %v480
      %v525 = vpack.c.b16 %v489, %v485
      %v526 = vpack.c.b16 %v490, %v486
      %v527 = vpack.c.b16 %v491, %v487
      %v528 = vpack.c.b16 %v492, %v488
      %v529 = vpack.c.b16 %v497, %v493
      %v530 = vpack.c.b16 %v498, %v494
      %v531 = vpack.c.b16 %v499, %v495
      %v532 = vpack.c.b16 %v500, %v496
      %565 = vmatprep.subr.bf16.mxu0 %v530
      %566 = vmatpush1.bf16.msra.mxu0 %v529
      %567 = vmatprep.subr.bf16.mxu0 %v526
      %568 = vmatpush1.bf16.msra.mxu0 %v525
      %569 = vmatprep.subr.bf16.mxu0 %v522
      %570 = vmatpush1.bf16.msra.mxu0 %v521
      %571 = vmatprep.subr.bf16.mxu0 %v518
      %572 = vmatpush1.bf16.msra.mxu0 %v517
      %573 = vmatprep.subr.bf16.mxu0 %v514
      %574 = vmatpush1.bf16.msra.mxu0 %v513
      %575 = vmatprep.subr.bf16.mxu0 %v510
      %576 = vmatpush1.bf16.msra.mxu0 %v509
      %577 = vmatprep.subr.bf16.mxu0 %v506
      %578 = vmatpush1.bf16.msra.mxu0 %v505
      %579 = vmatprep.subr.bf16.mxu0 %v502
      %580 = vmatpush1.bf16.msra.mxu0 %v501
      %581 = vmatprep.subr.bf16.mxu0 0
      %582 = vmatpush2.bf16.msra.mxu0 0
      %583 = vmatprep.subr.bf16.mxu0 0
      %584 = vmatpush2.bf16.msra.mxu0 0
      %585 = vmatprep.subr.bf16.mxu0 0
      %586 = vmatpush2.bf16.msra.mxu0 0
      %587 = vmatprep.subr.bf16.mxu0 0
      %588 = vmatpush2.bf16.msra.mxu0 0
      %589 = vmatprep.subr.bf16.mxu0 0
      %590 = vmatpush2.bf16.msra.mxu0 0
      %591 = vmatprep.subr.bf16.mxu0 0
      %592 = vmatpush2.bf16.msra.mxu0 0
      %593 = vmatprep.subr.bf16.mxu0 0
      %594 = vmatpush2.bf16.msra.mxu0 0
      %595 = vmatprep.subr.bf16.mxu0 0
      %596 = vmatpush2.bf16.msra.mxu0 0
      %597 = vmatprep.mubr.bf16.mxu0 0
      %598 = vmatmul.mubr.bf16.gmra.mxu0 %v404
      %v599 = vpop.f32.mrf.mxu0
      %v600 = vadd.f32 0.0, %v599
      %v601 = vpop.f32.mrf.mxu0
      %v602 = vadd.f32 0.0, %v601
      %v603 = vpop.f32.mrf.mxu0
      %v604 = vpop.f32.mrf.mxu0
      %605 = vdwg.mxu0
      %606 = vmatprep.subr.bf16.mxu0 %v532
      %607 = vmatpush1.bf16.msra.mxu0 %v531
      %608 = vmatprep.subr.bf16.mxu0 %v528
      %609 = vmatpush1.bf16.msra.mxu0 %v527
      %610 = vmatprep.subr.bf16.mxu0 %v524
      %611 = vmatpush1.bf16.msra.mxu0 %v523
      %612 = vmatprep.subr.bf16.mxu0 %v520
      %613 = vmatpush1.bf16.msra.mxu0 %v519
      %614 = vmatprep.subr.bf16.mxu0 %v516
      %615 = vmatpush1.bf16.msra.mxu0 %v515
      %616 = vmatprep.subr.bf16.mxu0 %v512
      %617 = vmatpush1.bf16.msra.mxu0 %v511
      %618 = vmatprep.subr.bf16.mxu0 %v508
      %619 = vmatpush1.bf16.msra.mxu0 %v507
      %620 = vmatprep.subr.bf16.mxu0 %v504
      %621 = vmatpush1.bf16.msra.mxu0 %v503
      %622 = vmatprep.subr.bf16.mxu0 0
      %623 = vmatpush2.bf16.msra.mxu0 0
      %624 = vmatprep.subr.bf16.mxu0 0
      %625 = vmatpush2.bf16.msra.mxu0 0
      %626 = vmatprep.subr.bf16.mxu0 0
      %627 = vmatpush2.bf16.msra.mxu0 0
      %628 = vmatprep.subr.bf16.mxu0 0
      %629 = vmatpush2.bf16.msra.mxu0 0
      %630 = vmatprep.subr.bf16.mxu0 0
      %631 = vmatpush2.bf16.msra.mxu0 0
      %632 = vmatprep.subr.bf16.mxu0 0
      %633 = vmatpush2.bf16.msra.mxu0 0
      %634 = vmatprep.subr.bf16.mxu0 0
      %635 = vmatpush2.bf16.msra.mxu0 0
      %636 = vmatprep.subr.bf16.mxu0 0
      %637 = vmatpush2.bf16.msra.mxu0 0
      %638 = vmatprep.mubr.bf16.mxu0 0
      %639 = vmatmul.mubr.bf16.gmra.mxu0 %v404
      %v640 = vpop.f32.mrf.mxu0
      %v641 = vadd.f32 0.0, %v640
      %v642 = vpop.f32.mrf.mxu0
      %v643 = vadd.f32 0.0, %v642
      %v644 = vpop.f32.mrf.mxu0
      %v645 = vpop.f32.mrf.mxu0
      %646 = vdwg.mxu0
      %v647 = vadd.f32 %v400, %v600
      %v648 = vadd.f32 %v401, %v602
      %v649 = vadd.f32 %v402, %v641
      %v650 = vadd.f32 %v403, %v643
      %v651 = vxor.u32 %v647, 2147483648
      %v652 = vmul.f32 %v651, 1.442695
      %v653 = vpow.pop %v652
      %v654 = vadd.f32 %v653, 1.0
      %v655 = vrcp.pop %v654
      %v656 = vmul.f32 1.0, %v655
      %v657 = vxor.u32 %v648, 2147483648
      %v658 = vmul.f32 %v657, 1.442695
      %v659 = vpow.pop %v658
      %v660 = vadd.f32 %v659, 1.0
      %v661 = vrcp.pop %v660
      %v662 = vmul.f32 1.0, %v661
      %v663 = vtanh.pop %v649
      %v664 = vxor.u32 %v650, 2147483648
      %v665 = vmul.f32 %v664, 1.442695
      %v666 = vpow.pop %v665
      %v667 = vadd.f32 %v666, 1.0
      %v668 = vrcp.pop %v667
      %v669 = vmul.f32 1.0, %v668
      %v670 = vmul.f32 %v662, %v396
      %v671 = vmul.f32 %v656, %v663
      %v672 = vadd.f32 %v670, %v671
      %v673 = vtanh.pop %v672
      %v674 = vmul.f32 %v669, %v673
      %vm675 = vcmp.gt.s32.totalorder %v394, 0
      %v676 = vsel %vm675, 1, 0
      %v677 = vcvt.s32.f32 %v676
      %679 = vset.pattern.permute.xlu0 0
      %680 = vperm.xlu0 %679, %v677
      %v681 = vpop.permute.xlu0 %680
      %v683 = vsub.f32 1.0, %v681
      %v684 = vmul.f32 %v681, %v672
      %v685 = vmul.f32 %v683, %v396
      %v686 = vadd.f32 %v684, %v685
      %687 = vst [vmem:[#allocation3] sm:$0xff] %v686
      %v688 = vmul.f32 %v681, %v674
      %v689 = vmul.f32 %v683, %v395
      %v690 = vadd.f32 %v688, %v689
      %691 = vst [vmem:[#allocation2] sm:$0xff] %v690
      %692 = vst [vmem:[#allocation13] sm:$0xff] %v688
      %v693 = vld [vmem:[#allocation2] sm:$0xff]
      %v694 = vld [vmem:[#allocation3] sm:$0xff]
      %s695 = smul.u32 1, 4
      %s696 = smul.addr %s695, 8
      %s697 = scalar_lea.vmem [#allocation4], %s696
      %v698 = vld [vmem:[%s697] sm:$0xff]
      %v699 = vld [vmem:[%s697 + $0x8] sm:$0xff]
      %v700 = vld [vmem:[%s697 + $0x10] sm:$0xff]
      %v701 = vld [vmem:[%s697 + $0x18] sm:$0xff]
      %v702 = vpack.c.bf16 %v693, %v693
      %703 = vmatprep.subr.bf16.mxu0 %v530
      %704 = vmatpush1.bf16.msra.mxu0 %v529
      %705 = vmatprep.subr.bf16.mxu0 %v526
      %706 = vmatpush1.bf16.msra.mxu0 %v525
      %707 = vmatprep.subr.bf16.mxu0 %v522
      %708 = vmatpush1.bf16.msra.mxu0 %v521
      %709 = vmatprep.subr.bf16.mxu0 %v518
      %710 = vmatpush1.bf16.msra.mxu0 %v517
      %711 = vmatprep.subr.bf16.mxu0 %v514
      %712 = vmatpush1.bf16.msra.mxu0 %v513
      %713 = vmatprep.subr.bf16.mxu0 %v510
      %714 = vmatpush1.bf16.msra.mxu0 %v509
      %715 = vmatprep.subr.bf16.mxu0 %v506
      %716 = vmatpush1.bf16.msra.mxu0 %v505
      %717 = vmatprep.subr.bf16.mxu0 %v502
      %718 = vmatpush1.bf16.msra.mxu0 %v501
      %719 = vmatprep.subr.bf16.mxu0 0
      %720 = vmatpush2.bf16.msra.mxu0 0
      %721 = vmatprep.subr.bf16.mxu0 0
      %722 = vmatpush2.bf16.msra.mxu0 0
      %723 = vmatprep.subr.bf16.mxu0 0
      %724 = vmatpush2.bf16.msra.mxu0 0
      %725 = vmatprep.subr.bf16.mxu0 0
      %726 = vmatpush2.bf16.msra.mxu0 0
      %727 = vmatprep.subr.bf16.mxu0 0
      %728 = vmatpush2.bf16.msra.mxu0 0
      %729 = vmatprep.subr.bf16.mxu0 0
      %730 = vmatpush2.bf16.msra.mxu0 0
      %731 = vmatprep.subr.bf16.mxu0 0
      %732 = vmatpush2.bf16.msra.mxu0 0
      %733 = vmatprep.subr.bf16.mxu0 0
      %734 = vmatpush2.bf16.msra.mxu0 0
      %735 = vmatprep.mubr.bf16.mxu0 0
      %736 = vmatmul.mubr.bf16.gmra.mxu0 %v702
      %v737 = vpop.f32.mrf.mxu0
      %v738 = vadd.f32 0.0, %v737
      %v739 = vpop.f32.mrf.mxu0
      %v740 = vadd.f32 0.0, %v739
      %v741 = vpop.f32.mrf.mxu0
      %v742 = vpop.f32.mrf.mxu0
      %743 = vdwg.mxu0
      %744 = vmatprep.subr.bf16.mxu0 %v532
      %745 = vmatpush1.bf16.msra.mxu0 %v531
      %746 = vmatprep.subr.bf16.mxu0 %v528
      %747 = vmatpush1.bf16.msra.mxu0 %v527
      %748 = vmatprep.subr.bf16.mxu0 %v524
      %749 = vmatpush1.bf16.msra.mxu0 %v523
      %750 = vmatprep.subr.bf16.mxu0 %v520
      %751 = vmatpush1.bf16.msra.mxu0 %v519
      %752 = vmatprep.subr.bf16.mxu0 %v516
      %753 = vmatpush1.bf16.msra.mxu0 %v515
      %754 = vmatprep.subr.bf16.mxu0 %v512
      %755 = vmatpush1.bf16.msra.mxu0 %v511
      %756 = vmatprep.subr.bf16.mxu0 %v508
      %757 = vmatpush1.bf16.msra.mxu0 %v507
      %758 = vmatprep.subr.bf16.mxu0 %v504
      %759 = vmatpush1.bf16.msra.mxu0 %v503
      %760 = vmatprep.subr.bf16.mxu0 0
      %761 = vmatpush2.bf16.msra.mxu0 0
      %762 = vmatprep.subr.bf16.mxu0 0
      %763 = vmatpush2.bf16.msra.mxu0 0
      %764 = vmatprep.subr.bf16.mxu0 0
      %765 = vmatpush2.bf16.msra.mxu0 0
      %766 = vmatprep.subr.bf16.mxu0 0
      %767 = vmatpush2.bf16.msra.mxu0 0
      %768 = vmatprep.subr.bf16.mxu0 0
      %769 = vmatpush2.bf16.msra.mxu0 0
      %770 = vmatprep.subr.bf16.mxu0 0
      %771 = vmatpush2.bf16.msra.mxu0 0
      %772 = vmatprep.subr.bf16.mxu0 0
      %773 = vmatpush2.bf16.msra.mxu0 0
      %774 = vmatprep.subr.bf16.mxu0 0
      %775 = vmatpush2.bf16.msra.mxu0 0
      %776 = vmatprep.mubr.bf16.mxu0 0
      %777 = vmatmul.mubr.bf16.gmra.mxu0 %v702
      %v778 = vpop.f32.mrf.mxu0
      %v779 = vadd.f32 0.0, %v778
      %v780 = vpop.f32.mrf.mxu0
      %v781 = vadd.f32 0.0, %v780
      %v782 = vpop.f32.mrf.mxu0
      %v783 = vpop.f32.mrf.mxu0
      %784 = vdwg.mxu0
      %v785 = vadd.f32 %v698, %v738
      %v786 = vadd.f32 %v699, %v740
      %v787 = vadd.f32 %v700, %v779
      %v788 = vadd.f32 %v701, %v781
      %v789 = vxor.u32 %v785, 2147483648
      %v790 = vmul.f32 %v789, 1.442695
      %v791 = vpow.pop %v790
      %v792 = vadd.f32 %v791, 1.0
      %v793 = vrcp.pop %v792
      %v794 = vmul.f32 1.0, %v793
      %v795 = vxor.u32 %v786, 2147483648
      %v796 = vmul.f32 %v795, 1.442695
      %v797 = vpow.pop %v796
      %v798 = vadd.f32 %v797, 1.0
      %v799 = vrcp.pop %v798
      %v800 = vmul.f32 1.0, %v799
      %v801 = vtanh.pop %v787
      %v802 = vxor.u32 %v788, 2147483648
      %v803 = vmul.f32 %v802, 1.442695
      %v804 = vpow.pop %v803
      %v805 = vadd.f32 %v804, 1.0
      %v806 = vrcp.pop %v805
      %v807 = vmul.f32 1.0, %v806
      %v808 = vmul.f32 %v800, %v694
      %v809 = vmul.f32 %v794, %v801
      %v810 = vadd.f32 %v808, %v809
      %v811 = vtanh.pop %v810
      %v812 = vmul.f32 %v807, %v811
      %vm813 = vcmp.gt.s32.totalorder %v394, 1
      %v814 = vsel %vm813, 1, 0
      %v815 = vcvt.s32.f32 %v814
      %817 = vset.pattern.permute.xlu0 0
      %818 = vperm.xlu0 %817, %v815
      %v819 = vpop.permute.xlu0 %818
      %v821 = vsub.f32 1.0, %v819
      %v822 = vmul.f32 %v819, %v810
      %v823 = vmul.f32 %v821, %v694
      %v824 = vadd.f32 %v822, %v823
      %825 = vst [vmem:[#allocation3] sm:$0xff] %v824
      %v826 = vmul.f32 %v819, %v812
      %v827 = vmul.f32 %v821, %v693
      %v828 = vadd.f32 %v826, %v827
      %829 = vst [vmem:[#allocation2] sm:$0xff] %v828
      %s830 = scalar_lea.vmem [#allocation13], 8
      %831 = vst [vmem:[%s830] sm:$0xff] %v826
      %v832 = vld [vmem:[#allocation2] sm:$0xff]
      %v833 = vld [vmem:[#allocation3] sm:$0xff]
      %s834 = smul.u32 2, 4
      %s835 = smul.addr %s834, 8
      %s836 = scalar_lea.vmem [#allocation4], %s835
      %v837 = vld [vmem:[%s836] sm:$0xff]
      %v838 = vld [vmem:[%s836 + $0x8] sm:$0xff]
      %v839 = vld [vmem:[%s836 + $0x10] sm:$0xff]
      %v840 = vld [vmem:[%s836 + $0x18] sm:$0xff]
      %v841 = vpack.c.bf16 %v832, %v832
      %842 = vmatprep.subr.bf16.mxu0 %v530
      %843 = vmatpush1.bf16.msra.mxu0 %v529
      %844 = vmatprep.subr.bf16.mxu0 %v526
      %845 = vmatpush1.bf16.msra.mxu0 %v525
      %846 = vmatprep.subr.bf16.mxu0 %v522
      %847 = vmatpush1.bf16.msra.mxu0 %v521
      %848 = vmatprep.subr.bf16.mxu0 %v518
      %849 = vmatpush1.bf16.msra.mxu0 %v517
      %850 = vmatprep.subr.bf16.mxu0 %v514
      %851 = vmatpush1.bf16.msra.mxu0 %v513
      %852 = vmatprep.subr.bf16.mxu0 %v510
      %853 = vmatpush1.bf16.msra.mxu0 %v509
      %854 = vmatprep.subr.bf16.mxu0 %v506
      %855 = vmatpush1.bf16.msra.mxu0 %v505
      %856 = vmatprep.subr.bf16.mxu0 %v502
      %857 = vmatpush1.bf16.msra.mxu0 %v501
      %858 = vmatprep.subr.bf16.mxu0 0
      %859 = vmatpush2.bf16.msra.mxu0 0
      %860 = vmatprep.subr.bf16.mxu0 0
      %861 = vmatpush2.bf16.msra.mxu0 0
      %862 = vmatprep.subr.bf16.mxu0 0
      %863 = vmatpush2.bf16.msra.mxu0 0
      %864 = vmatprep.subr.bf16.mxu0 0
      %865 = vmatpush2.bf16.msra.mxu0 0
      %866 = vmatprep.subr.bf16.mxu0 0
      %867 = vmatpush2.bf16.msra.mxu0 0
      %868 = vmatprep.subr.bf16.mxu0 0
      %869 = vmatpush2.bf16.msra.mxu0 0
      %870 = vmatprep.subr.bf16.mxu0 0
      %871 = vmatpush2.bf16.msra.mxu0 0
      %872 = vmatprep.subr.bf16.mxu0 0
      %873 = vmatpush2.bf16.msra.mxu0 0
      %874 = vmatprep.mubr.bf16.mxu0 0
      %875 = vmatmul.mubr.bf16.gmra.mxu0 %v841
      %v876 = vpop.f32.mrf.mxu0
      %v877 = vadd.f32 0.0, %v876
      %v878 = vpop.f32.mrf.mxu0
      %v879 = vadd.f32 0.0, %v878
      %v880 = vpop.f32.mrf.mxu0
      %v881 = vpop.f32.mrf.mxu0
      %882 = vdwg.mxu0
      %883 = vmatprep.subr.bf16.mxu0 %v532
      %884 = vmatpush1.bf16.msra.mxu0 %v531
      %885 = vmatprep.subr.bf16.mxu0 %v528
      %886 = vmatpush1.bf16.msra.mxu0 %v527
      %887 = vmatprep.subr.bf16.mxu0 %v524
      %888 = vmatpush1.bf16.msra.mxu0 %v523
      %889 = vmatprep.subr.bf16.mxu0 %v520
      %890 = vmatpush1.bf16.msra.mxu0 %v519
      %891 = vmatprep.subr.bf16.mxu0 %v516
      %892 = vmatpush1.bf16.msra.mxu0 %v515
      %893 = vmatprep.subr.bf16.mxu0 %v512
      %894 = vmatpush1.bf16.msra.mxu0 %v511
      %895 = vmatprep.subr.bf16.mxu0 %v508
      %896 = vmatpush1.bf16.msra.mxu0 %v507
      %897 = vmatprep.subr.bf16.mxu0 %v504
      %898 = vmatpush1.bf16.msra.mxu0 %v503
      %899 = vmatprep.subr.bf16.mxu0 0
      %900 = vmatpush2.bf16.msra.mxu0 0
      %901 = vmatprep.subr.bf16.mxu0 0
      %902 = vmatpush2.bf16.msra.mxu0 0
      %903 = vmatprep.subr.bf16.mxu0 0
      %904 = vmatpush2.bf16.msra.mxu0 0
      %905 = vmatprep.subr.bf16.mxu0 0
      %906 = vmatpush2.bf16.msra.mxu0 0
      %907 = vmatprep.subr.bf16.mxu0 0
      %908 = vmatpush2.bf16.msra.mxu0 0
      %909 = vmatprep.subr.bf16.mxu0 0
      %910 = vmatpush2.bf16.msra.mxu0 0
      %911 = vmatprep.subr.bf16.mxu0 0
      %912 = vmatpush2.bf16.msra.mxu0 0
      %913 = vmatprep.subr.bf16.mxu0 0
      %914 = vmatpush2.bf16.msra.mxu0 0
      %915 = vmatprep.mubr.bf16.mxu0 0
      %916 = vmatmul.mubr.bf16.gmra.mxu0 %v841
      %v917 = vpop.f32.mrf.mxu0
      %v918 = vadd.f32 0.0, %v917
      %v919 = vpop.f32.mrf.mxu0
      %v920 = vadd.f32 0.0, %v919
      %v921 = vpop.f32.mrf.mxu0
      %v922 = vpop.f32.mrf.mxu0
      %923 = vdwg.mxu0
      %v924 = vadd.f32 %v837, %v877
      %v925 = vadd.f32 %v838, %v879
      %v926 = vadd.f32 %v839, %v918
      %v927 = vadd.f32 %v840, %v920
      %v928 = vxor.u32 %v924, 2147483648
      %v929 = vmul.f32 %v928, 1.442695
      %v930 = vpow.pop %v929
      %v931 = vadd.f32 %v930, 1.0
      %v932 = vrcp.pop %v931
      %v933 = vmul.f32 1.0, %v932
      %v934 = vxor.u32 %v925, 2147483648
      %v935 = vmul.f32 %v934, 1.442695
      %v936 = vpow.pop %v935
      %v937 = vadd.f32 %v936, 1.0
      %v938 = vrcp.pop %v937
      %v939 = vmul.f32 1.0, %v938
      %v940 = vtanh.pop %v926
      %v941 = vxor.u32 %v927, 2147483648
      %v942 = vmul.f32 %v941, 1.442695
      %v943 = vpow.pop %v942
      %v944 = vadd.f32 %v943, 1.0
      %v945 = vrcp.pop %v944
      %v946 = vmul.f32 1.0, %v945
      %v947 = vmul.f32 %v939, %v833
      %v948 = vmul.f32 %v933, %v940
      %v949 = vadd.f32 %v947, %v948
      %v950 = vtanh.pop %v949
      %v951 = vmul.f32 %v946, %v950
      %vm952 = vcmp.gt.s32.totalorder %v394, 2
      %v953 = vsel %vm952, 1, 0
      %v954 = vcvt.s32.f32 %v953
      %956 = vset.pattern.permute.xlu0 0
      %957 = vperm.xlu0 %956, %v954
      %v958 = vpop.permute.xlu0 %957
      %v960 = vsub.f32 1.0, %v958
      %v961 = vmul.f32 %v958, %v949
      %v962 = vmul.f32 %v960, %v833
      %v963 = vadd.f32 %v961, %v962
      %964 = vst [vmem:[#allocation3] sm:$0xff] %v963
      %v965 = vmul.f32 %v958, %v951
      %v966 = vmul.f32 %v960, %v832
      %v967 = vadd.f32 %v965, %v966
      %968 = vst [vmem:[#allocation2] sm:$0xff] %v967
      %s969 = scalar_lea.vmem [#allocation13], 16
      %970 = vst [vmem:[%s969] sm:$0xff] %v965
      %v971 = vld [vmem:[#allocation2] sm:$0xff]
      %v972 = vld [vmem:[#allocation3] sm:$0xff]
      %s973 = smul.u32 3, 4
      %s974 = smul.addr %s973, 8
      %s975 = scalar_lea.vmem [#allocation4], %s974
      %v976 = vld [vmem:[%s975] sm:$0xff]
      %v977 = vld [vmem:[%s975 + $0x8] sm:$0xff]
      %v978 = vld [vmem:[%s975 + $0x10] sm:$0xff]
      %v979 = vld [vmem:[%s975 + $0x18] sm:$0xff]
      %v980 = vpack.c.bf16 %v971, %v971
      %981 = vmatprep.subr.bf16.mxu0 %v530
      %982 = vmatpush1.bf16.msra.mxu0 %v529
      %983 = vmatprep.subr.bf16.mxu0 %v526
      %984 = vmatpush1.bf16.msra.mxu0 %v525
      %985 = vmatprep.subr.bf16.mxu0 %v522
      %986 = vmatpush1.bf16.msra.mxu0 %v521
      %987 = vmatprep.subr.bf16.mxu0 %v518
      %988 = vmatpush1.bf16.msra.mxu0 %v517
      %989 = vmatprep.subr.bf16.mxu0 %v514
      %990 = vmatpush1.bf16.msra.mxu0 %v513
      %991 = vmatprep.subr.bf16.mxu0 %v510
      %992 = vmatpush1.bf16.msra.mxu0 %v509
      %993 = vmatprep.subr.bf16.mxu0 %v506
      %994 = vmatpush1.bf16.msra.mxu0 %v505
      %995 = vmatprep.subr.bf16.mxu0 %v502
      %996 = vmatpush1.bf16.msra.mxu0 %v501
      %997 = vmatprep.subr.bf16.mxu0 0
      %998 = vmatpush2.bf16.msra.mxu0 0
      %999 = vmatprep.subr.bf16.mxu0 0
      %1000 = vmatpush2.bf16.msra.mxu0 0
      %1001 = vmatprep.subr.bf16.mxu0 0
      %1002 = vmatpush2.bf16.msra.mxu0 0
      %1003 = vmatprep.subr.bf16.mxu0 0
      %1004 = vmatpush2.bf16.msra.mxu0 0
      %1005 = vmatprep.subr.bf16.mxu0 0
      %1006 = vmatpush2.bf16.msra.mxu0 0
      %1007 = vmatprep.subr.bf16.mxu0 0
      %1008 = vmatpush2.bf16.msra.mxu0 0
      %1009 = vmatprep.subr.bf16.mxu0 0
      %1010 = vmatpush2.bf16.msra.mxu0 0
      %1011 = vmatprep.subr.bf16.mxu0 0
      %1012 = vmatpush2.bf16.msra.mxu0 0
      %1013 = vmatprep.mubr.bf16.mxu0 0
      %1014 = vmatmul.mubr.bf16.gmra.mxu0 %v980
      %v1015 = vpop.f32.mrf.mxu0
      %v1016 = vadd.f32 0.0, %v1015
      %v1017 = vpop.f32.mrf.mxu0
      %v1018 = vadd.f32 0.0, %v1017
      %v1019 = vpop.f32.mrf.mxu0
      %v1020 = vpop.f32.mrf.mxu0
      %1021 = vdwg.mxu0
      %1022 = vmatprep.subr.bf16.mxu0 %v532
      %1023 = vmatpush1.bf16.msra.mxu0 %v531
      %1024 = vmatprep.subr.bf16.mxu0 %v528
      %1025 = vmatpush1.bf16.msra.mxu0 %v527
      %1026 = vmatprep.subr.bf16.mxu0 %v524
      %1027 = vmatpush1.bf16.msra.mxu0 %v523
      %1028 = vmatprep.subr.bf16.mxu0 %v520
      %1029 = vmatpush1.bf16.msra.mxu0 %v519
      %1030 = vmatprep.subr.bf16.mxu0 %v516
      %1031 = vmatpush1.bf16.msra.mxu0 %v515
      %1032 = vmatprep.subr.bf16.mxu0 %v512
      %1033 = vmatpush1.bf16.msra.mxu0 %v511
      %1034 = vmatprep.subr.bf16.mxu0 %v508
      %1035 = vmatpush1.bf16.msra.mxu0 %v507
      %1036 = vmatprep.subr.bf16.mxu0 %v504
      %1037 = vmatpush1.bf16.msra.mxu0 %v503
      %1038 = vmatprep.subr.bf16.mxu0 0
      %1039 = vmatpush2.bf16.msra.mxu0 0
      %1040 = vmatprep.subr.bf16.mxu0 0
      %1041 = vmatpush2.bf16.msra.mxu0 0
      %1042 = vmatprep.subr.bf16.mxu0 0
      %1043 = vmatpush2.bf16.msra.mxu0 0
      %1044 = vmatprep.subr.bf16.mxu0 0
      %1045 = vmatpush2.bf16.msra.mxu0 0
      %1046 = vmatprep.subr.bf16.mxu0 0
      %1047 = vmatpush2.bf16.msra.mxu0 0
      %1048 = vmatprep.subr.bf16.mxu0 0
      %1049 = vmatpush2.bf16.msra.mxu0 0
      %1050 = vmatprep.subr.bf16.mxu0 0
      %1051 = vmatpush2.bf16.msra.mxu0 0
      %1052 = vmatprep.subr.bf16.mxu0 0
      %1053 = vmatpush2.bf16.msra.mxu0 0
      %1054 = vmatprep.mubr.bf16.mxu0 0
      %1055 = vmatmul.mubr.bf16.gmra.mxu0 %v980
      %v1056 = vpop.f32.mrf.mxu0
      %v1057 = vadd.f32 0.0, %v1056
      %v1058 = vpop.f32.mrf.mxu0
      %v1059 = vadd.f32 0.0, %v1058
      %v1060 = vpop.f32.mrf.mxu0
      %v1061 = vpop.f32.mrf.mxu0
      %1062 = vdwg.mxu0
      %v1063 = vadd.f32 %v976, %v1016
      %v1064 = vadd.f32 %v977, %v1018
      %v1065 = vadd.f32 %v978, %v1057
      %v1066 = vadd.f32 %v979, %v1059
      %v1067 = vxor.u32 %v1063, 2147483648
      %v1068 = vmul.f32 %v1067, 1.442695
      %v1069 = vpow.pop %v1068
      %v1070 = vadd.f32 %v1069, 1.0
      %v1071 = vrcp.pop %v1070
      %v1072 = vmul.f32 1.0, %v1071
      %v1073 = vxor.u32 %v1064, 2147483648
      %v1074 = vmul.f32 %v1073, 1.442695
      %v1075 = vpow.pop %v1074
      %v1076 = vadd.f32 %v1075, 1.0
      %v1077 = vrcp.pop %v1076
      %v1078 = vmul.f32 1.0, %v1077
      %v1079 = vtanh.pop %v1065
      %v1080 = vxor.u32 %v1066, 2147483648
      %v1081 = vmul.f32 %v1080, 1.442695
      %v1082 = vpow.pop %v1081
      %v1083 = vadd.f32 %v1082, 1.0
      %v1084 = vrcp.pop %v1083
      %v1085 = vmul.f32 1.0, %v1084
      %v1086 = vmul.f32 %v1078, %v972
      %v1087 = vmul.f32 %v1072, %v1079
      %v1088 = vadd.f32 %v1086, %v1087
      %v1089 = vtanh.pop %v1088
      %v1090 = vmul.f32 %v1085, %v1089
      %vm1091 = vcmp.gt.s32.totalorder %v394, 3
      %v1092 = vsel %vm1091, 1, 0
      %v1093 = vcvt.s32.f32 %v1092
      %1095 = vset.pattern.permute.xlu0 0
      %1096 = vperm.xlu0 %1095, %v1093
      %v1097 = vpop.permute.xlu0 %1096
      %v1099 = vsub.f32 1.0, %v1097
      %v1100 = vmul.f32 %v1097, %v1088
      %v1101 = vmul.f32 %v1099, %v972
      %v1102 = vadd.f32 %v1100, %v1101
      %1103 = vst [vmem:[#allocation3] sm:$0xff] %v1102
      %v1104 = vmul.f32 %v1097, %v1090
      %v1105 = vmul.f32 %v1099, %v971
      %v1106 = vadd.f32 %v1104, %v1105
      %1107 = vst [vmem:[#allocation2] sm:$0xff] %v1106
      %s1108 = scalar_lea.vmem [#allocation13], 24
      %1109 = vst [vmem:[%s1108] sm:$0xff] %v1104
      %v1110 = vld [vmem:[#allocation2] sm:$0xff]
      %v1111 = vld [vmem:[#allocation3] sm:$0xff]
      %s1112 = smul.u32 4, 4
      %s1113 = smul.addr %s1112, 8
      %s1114 = scalar_lea.vmem [#allocation4], %s1113
      %v1115 = vld [vmem:[%s1114] sm:$0xff]
      %v1116 = vld [vmem:[%s1114 + $0x8] sm:$0xff]
      %v1117 = vld [vmem:[%s1114 + $0x10] sm:$0xff]
      %v1118 = vld [vmem:[%s1114 + $0x18] sm:$0xff]
      %v1119 = vpack.c.bf16 %v1110, %v1110
      %1120 = vmatprep.subr.bf16.mxu0 %v530
      %1121 = vmatpush1.bf16.msra.mxu0 %v529
      %1122 = vmatprep.subr.bf16.mxu0 %v526
      %1123 = vmatpush1.bf16.msra.mxu0 %v525
      %1124 = vmatprep.subr.bf16.mxu0 %v522
      %1125 = vmatpush1.bf16.msra.mxu0 %v521
      %1126 = vmatprep.subr.bf16.mxu0 %v518
      %1127 = vmatpush1.bf16.msra.mxu0 %v517
      %1128 = vmatprep.subr.bf16.mxu0 %v514
      %1129 = vmatpush1.bf16.msra.mxu0 %v513
      %1130 = vmatprep.subr.bf16.mxu0 %v510
      %1131 = vmatpush1.bf16.msra.mxu0 %v509
      %1132 = vmatprep.subr.bf16.mxu0 %v506
      %1133 = vmatpush1.bf16.msra.mxu0 %v505
      %1134 = vmatprep.subr.bf16.mxu0 %v502
      %1135 = vmatpush1.bf16.msra.mxu0 %v501
      %1136 = vmatprep.subr.bf16.mxu0 0
      %1137 = vmatpush2.bf16.msra.mxu0 0
      %1138 = vmatprep.subr.bf16.mxu0 0
      %1139 = vmatpush2.bf16.msra.mxu0 0
      %1140 = vmatprep.subr.bf16.mxu0 0
      %1141 = vmatpush2.bf16.msra.mxu0 0
      %1142 = vmatprep.subr.bf16.mxu0 0
      %1143 = vmatpush2.bf16.msra.mxu0 0
      %1144 = vmatprep.subr.bf16.mxu0 0
      %1145 = vmatpush2.bf16.msra.mxu0 0
      %1146 = vmatprep.subr.bf16.mxu0 0
      %1147 = vmatpush2.bf16.msra.mxu0 0
      %1148 = vmatprep.subr.bf16.mxu0 0
      %1149 = vmatpush2.bf16.msra.mxu0 0
      %1150 = vmatprep.subr.bf16.mxu0 0
      %1151 = vmatpush2.bf16.msra.mxu0 0
      %1152 = vmatprep.mubr.bf16.mxu0 0
      %1153 = vmatmul.mubr.bf16.gmra.mxu0 %v1119
      %v1154 = vpop.f32.mrf.mxu0
      %v1155 = vadd.f32 0.0, %v1154
      %v1156 = vpop.f32.mrf.mxu0
      %v1157 = vadd.f32 0.0, %v1156
      %v1158 = vpop.f32.mrf.mxu0
      %v1159 = vpop.f32.mrf.mxu0
      %1160 = vdwg.mxu0
      %1161 = vmatprep.subr.bf16.mxu0 %v532
      %1162 = vmatpush1.bf16.msra.mxu0 %v531
      %1163 = vmatprep.subr.bf16.mxu0 %v528
      %1164 = vmatpush1.bf16.msra.mxu0 %v527
      %1165 = vmatprep.subr.bf16.mxu0 %v524
      %1166 = vmatpush1.bf16.msra.mxu0 %v523
      %1167 = vmatprep.subr.bf16.mxu0 %v520
      %1168 = vmatpush1.bf16.msra.mxu0 %v519
      %1169 = vmatprep.subr.bf16.mxu0 %v516
      %1170 = vmatpush1.bf16.msra.mxu0 %v515
      %1171 = vmatprep.subr.bf16.mxu0 %v512
      %1172 = vmatpush1.bf16.msra.mxu0 %v511
      %1173 = vmatprep.subr.bf16.mxu0 %v508
      %1174 = vmatpush1.bf16.msra.mxu0 %v507
      %1175 = vmatprep.subr.bf16.mxu0 %v504
      %1176 = vmatpush1.bf16.msra.mxu0 %v503
      %1177 = vmatprep.subr.bf16.mxu0 0
      %1178 = vmatpush2.bf16.msra.mxu0 0
      %1179 = vmatprep.subr.bf16.mxu0 0
      %1180 = vmatpush2.bf16.msra.mxu0 0
      %1181 = vmatprep.subr.bf16.mxu0 0
      %1182 = vmatpush2.bf16.msra.mxu0 0
      %1183 = vmatprep.subr.bf16.mxu0 0
      %1184 = vmatpush2.bf16.msra.mxu0 0
      %1185 = vmatprep.subr.bf16.mxu0 0
      %1186 = vmatpush2.bf16.msra.mxu0 0
      %1187 = vmatprep.subr.bf16.mxu0 0
      %1188 = vmatpush2.bf16.msra.mxu0 0
      %1189 = vmatprep.subr.bf16.mxu0 0
      %1190 = vmatpush2.bf16.msra.mxu0 0
      %1191 = vmatprep.subr.bf16.mxu0 0
      %1192 = vmatpush2.bf16.msra.mxu0 0
      %1193 = vmatprep.mubr.bf16.mxu0 0
      %1194 = vmatmul.mubr.bf16.gmra.mxu0 %v1119
      %v1195 = vpop.f32.mrf.mxu0
      %v1196 = vadd.f32 0.0, %v1195
      %v1197 = vpop.f32.mrf.mxu0
      %v1198 = vadd.f32 0.0, %v1197
      %v1199 = vpop.f32.mrf.mxu0
      %v1200 = vpop.f32.mrf.mxu0
      %1201 = vdwg.mxu0
      %v1202 = vadd.f32 %v1115, %v1155
      %v1203 = vadd.f32 %v1116, %v1157
      %v1204 = vadd.f32 %v1117, %v1196
      %v1205 = vadd.f32 %v1118, %v1198
      %v1206 = vxor.u32 %v1202, 2147483648
      %v1207 = vmul.f32 %v1206, 1.442695
      %v1208 = vpow.pop %v1207
      %v1209 = vadd.f32 %v1208, 1.0
      %v1210 = vrcp.pop %v1209
      %v1211 = vmul.f32 1.0, %v1210
      %v1212 = vxor.u32 %v1203, 2147483648
      %v1213 = vmul.f32 %v1212, 1.442695
      %v1214 = vpow.pop %v1213
      %v1215 = vadd.f32 %v1214, 1.0
      %v1216 = vrcp.pop %v1215
      %v1217 = vmul.f32 1.0, %v1216
      %v1218 = vtanh.pop %v1204
      %v1219 = vxor.u32 %v1205, 2147483648
      %v1220 = vmul.f32 %v1219, 1.442695
      %v1221 = vpow.pop %v1220
      %v1222 = vadd.f32 %v1221, 1.0
      %v1223 = vrcp.pop %v1222
      %v1224 = vmul.f32 1.0, %v1223
      %v1225 = vmul.f32 %v1217, %v1111
      %v1226 = vmul.f32 %v1211, %v1218
      %v1227 = vadd.f32 %v1225, %v1226
      %v1228 = vtanh.pop %v1227
      %v1229 = vmul.f32 %v1224, %v1228
      %vm1230 = vcmp.gt.s32.totalorder %v394, 4
      %v1231 = vsel %vm1230, 1, 0
      %v1232 = vcvt.s32.f32 %v1231
      %1234 = vset.pattern.permute.xlu0 0
      %1235 = vperm.xlu0 %1234, %v1232
      %v1236 = vpop.permute.xlu0 %1235
      %v1238 = vsub.f32 1.0, %v1236
      %v1239 = vmul.f32 %v1236, %v1227
      %v1240 = vmul.f32 %v1238, %v1111
      %v1241 = vadd.f32 %v1239, %v1240
      %1242 = vst [vmem:[#allocation3] sm:$0xff] %v1241
      %v1243 = vmul.f32 %v1236, %v1229
      %v1244 = vmul.f32 %v1238, %v1110
      %v1245 = vadd.f32 %v1243, %v1244
      %1246 = vst [vmem:[#allocation2] sm:$0xff] %v1245
      %s1247 = scalar_lea.vmem [#allocation13], 32
      %1248 = vst [vmem:[%s1247] sm:$0xff] %v1243
      %v1249 = vld [vmem:[#allocation2] sm:$0xff]
      %v1250 = vld [vmem:[#allocation3] sm:$0xff]
      %s1251 = smul.u32 5, 4
      %s1252 = smul.addr %s1251, 8
      %s1253 = scalar_lea.vmem [#allocation4], %s1252
      %v1254 = vld [vmem:[%s1253] sm:$0xff]
      %v1255 = vld [vmem:[%s1253 + $0x8] sm:$0xff]
      %v1256 = vld [vmem:[%s1253 + $0x10] sm:$0xff]
      %v1257 = vld [vmem:[%s1253 + $0x18] sm:$0xff]
      %v1258 = vpack.c.bf16 %v1249, %v1249
      %1259 = vmatprep.subr.bf16.mxu0 %v530
      %1260 = vmatpush1.bf16.msra.mxu0 %v529
      %1261 = vmatprep.subr.bf16.mxu0 %v526
      %1262 = vmatpush1.bf16.msra.mxu0 %v525
      %1263 = vmatprep.subr.bf16.mxu0 %v522
      %1264 = vmatpush1.bf16.msra.mxu0 %v521
      %1265 = vmatprep.subr.bf16.mxu0 %v518
      %1266 = vmatpush1.bf16.msra.mxu0 %v517
      %1267 = vmatprep.subr.bf16.mxu0 %v514
      %1268 = vmatpush1.bf16.msra.mxu0 %v513
      %1269 = vmatprep.subr.bf16.mxu0 %v510
      %1270 = vmatpush1.bf16.msra.mxu0 %v509
      %1271 = vmatprep.subr.bf16.mxu0 %v506
      %1272 = vmatpush1.bf16.msra.mxu0 %v505
      %1273 = vmatprep.subr.bf16.mxu0 %v502
      %1274 = vmatpush1.bf16.msra.mxu0 %v501
      %1275 = vmatprep.subr.bf16.mxu0 0
      %1276 = vmatpush2.bf16.msra.mxu0 0
      %1277 = vmatprep.subr.bf16.mxu0 0
      %1278 = vmatpush2.bf16.msra.mxu0 0
      %1279 = vmatprep.subr.bf16.mxu0 0
      %1280 = vmatpush2.bf16.msra.mxu0 0
      %1281 = vmatprep.subr.bf16.mxu0 0
      %1282 = vmatpush2.bf16.msra.mxu0 0
      %1283 = vmatprep.subr.bf16.mxu0 0
      %1284 = vmatpush2.bf16.msra.mxu0 0
      %1285 = vmatprep.subr.bf16.mxu0 0
      %1286 = vmatpush2.bf16.msra.mxu0 0
      %1287 = vmatprep.subr.bf16.mxu0 0
      %1288 = vmatpush2.bf16.msra.mxu0 0
      %1289 = vmatprep.subr.bf16.mxu0 0
      %1290 = vmatpush2.bf16.msra.mxu0 0
      %1291 = vmatprep.mubr.bf16.mxu0 0
      %1292 = vmatmul.mubr.bf16.gmra.mxu0 %v1258
      %v1293 = vpop.f32.mrf.mxu0
      %v1294 = vadd.f32 0.0, %v1293
      %v1295 = vpop.f32.mrf.mxu0
      %v1296 = vadd.f32 0.0, %v1295
      %v1297 = vpop.f32.mrf.mxu0
      %v1298 = vpop.f32.mrf.mxu0
      %1299 = vdwg.mxu0
      %1300 = vmatprep.subr.bf16.mxu0 %v532
      %1301 = vmatpush1.bf16.msra.mxu0 %v531
      %1302 = vmatprep.subr.bf16.mxu0 %v528
      %1303 = vmatpush1.bf16.msra.mxu0 %v527
      %1304 = vmatprep.subr.bf16.mxu0 %v524
      %1305 = vmatpush1.bf16.msra.mxu0 %v523
      %1306 = vmatprep.subr.bf16.mxu0 %v520
      %1307 = vmatpush1.bf16.msra.mxu0 %v519
      %1308 = vmatprep.subr.bf16.mxu0 %v516
      %1309 = vmatpush1.bf16.msra.mxu0 %v515
      %1310 = vmatprep.subr.bf16.mxu0 %v512
      %1311 = vmatpush1.bf16.msra.mxu0 %v511
      %1312 = vmatprep.subr.bf16.mxu0 %v508
      %1313 = vmatpush1.bf16.msra.mxu0 %v507
      %1314 = vmatprep.subr.bf16.mxu0 %v504
      %1315 = vmatpush1.bf16.msra.mxu0 %v503
      %1316 = vmatprep.subr.bf16.mxu0 0
      %1317 = vmatpush2.bf16.msra.mxu0 0
      %1318 = vmatprep.subr.bf16.mxu0 0
      %1319 = vmatpush2.bf16.msra.mxu0 0
      %1320 = vmatprep.subr.bf16.mxu0 0
      %1321 = vmatpush2.bf16.msra.mxu0 0
      %1322 = vmatprep.subr.bf16.mxu0 0
      %1323 = vmatpush2.bf16.msra.mxu0 0
      %1324 = vmatprep.subr.bf16.mxu0 0
      %1325 = vmatpush2.bf16.msra.mxu0 0
      %1326 = vmatprep.subr.bf16.mxu0 0
      %1327 = vmatpush2.bf16.msra.mxu0 0
      %1328 = vmatprep.subr.bf16.mxu0 0
      %1329 = vmatpush2.bf16.msra.mxu0 0
      %1330 = vmatprep.subr.bf16.mxu0 0
      %1331 = vmatpush2.bf16.msra.mxu0 0
      %1332 = vmatprep.mubr.bf16.mxu0 0
      %1333 = vmatmul.mubr.bf16.gmra.mxu0 %v1258
      %v1334 = vpop.f32.mrf.mxu0
      %v1335 = vadd.f32 0.0, %v1334
      %v1336 = vpop.f32.mrf.mxu0
      %v1337 = vadd.f32 0.0, %v1336
      %v1338 = vpop.f32.mrf.mxu0
      %v1339 = vpop.f32.mrf.mxu0
      %1340 = vdwg.mxu0
      %v1341 = vadd.f32 %v1254, %v1294
      %v1342 = vadd.f32 %v1255, %v1296
      %v1343 = vadd.f32 %v1256, %v1335
      %v1344 = vadd.f32 %v1257, %v1337
      %v1345 = vxor.u32 %v1341, 2147483648
      %v1346 = vmul.f32 %v1345, 1.442695
      %v1347 = vpow.pop %v1346
      %v1348 = vadd.f32 %v1347, 1.0
      %v1349 = vrcp.pop %v1348
      %v1350 = vmul.f32 1.0, %v1349
      %v1351 = vxor.u32 %v1342, 2147483648
      %v1352 = vmul.f32 %v1351, 1.442695
      %v1353 = vpow.pop %v1352
      %v1354 = vadd.f32 %v1353, 1.0
      %v1355 = vrcp.pop %v1354
      %v1356 = vmul.f32 1.0, %v1355
      %v1357 = vtanh.pop %v1343
      %v1358 = vxor.u32 %v1344, 2147483648
      %v1359 = vmul.f32 %v1358, 1.442695
      %v1360 = vpow.pop %v1359
      %v1361 = vadd.f32 %v1360, 1.0
      %v1362 = vrcp.pop %v1361
      %v1363 = vmul.f32 1.0, %v1362
      %v1364 = vmul.f32 %v1356, %v1250
      %v1365 = vmul.f32 %v1350, %v1357
      %v1366 = vadd.f32 %v1364, %v1365
      %v1367 = vtanh.pop %v1366
      %v1368 = vmul.f32 %v1363, %v1367
      %vm1369 = vcmp.gt.s32.totalorder %v394, 5
      %v1370 = vsel %vm1369, 1, 0
      %v1371 = vcvt.s32.f32 %v1370
      %1373 = vset.pattern.permute.xlu0 0
      %1374 = vperm.xlu0 %1373, %v1371
      %v1375 = vpop.permute.xlu0 %1374
      %v1377 = vsub.f32 1.0, %v1375
      %v1378 = vmul.f32 %v1375, %v1366
      %v1379 = vmul.f32 %v1377, %v1250
      %v1380 = vadd.f32 %v1378, %v1379
      %1381 = vst [vmem:[#allocation3] sm:$0xff] %v1380
      %v1382 = vmul.f32 %v1375, %v1368
      %v1383 = vmul.f32 %v1377, %v1249
      %v1384 = vadd.f32 %v1382, %v1383
      %1385 = vst [vmem:[#allocation2] sm:$0xff] %v1384
      %s1386 = scalar_lea.vmem [#allocation13], 40
      %1387 = vst [vmem:[%s1386] sm:$0xff] %v1382
      %v1388 = vld [vmem:[#allocation2] sm:$0xff]
      %v1389 = vld [vmem:[#allocation3] sm:$0xff]
      %s1390 = smul.u32 6, 4
      %s1391 = smul.addr %s1390, 8
      %s1392 = scalar_lea.vmem [#allocation4], %s1391
      %v1393 = vld [vmem:[%s1392] sm:$0xff]
      %v1394 = vld [vmem:[%s1392 + $0x8] sm:$0xff]
      %v1395 = vld [vmem:[%s1392 + $0x10] sm:$0xff]
      %v1396 = vld [vmem:[%s1392 + $0x18] sm:$0xff]
      %v1397 = vpack.c.bf16 %v1388, %v1388
      %1398 = vmatprep.subr.bf16.mxu0 %v530
      %1399 = vmatpush1.bf16.msra.mxu0 %v529
      %1400 = vmatprep.subr.bf16.mxu0 %v526
      %1401 = vmatpush1.bf16.msra.mxu0 %v525
      %1402 = vmatprep.subr.bf16.mxu0 %v522
      %1403 = vmatpush1.bf16.msra.mxu0 %v521
      %1404 = vmatprep.subr.bf16.mxu0 %v518
      %1405 = vmatpush1.bf16.msra.mxu0 %v517
      %1406 = vmatprep.subr.bf16.mxu0 %v514
      %1407 = vmatpush1.bf16.msra.mxu0 %v513
      %1408 = vmatprep.subr.bf16.mxu0 %v510
      %1409 = vmatpush1.bf16.msra.mxu0 %v509
      %1410 = vmatprep.subr.bf16.mxu0 %v506
      %1411 = vmatpush1.bf16.msra.mxu0 %v505
      %1412 = vmatprep.subr.bf16.mxu0 %v502
      %1413 = vmatpush1.bf16.msra.mxu0 %v501
      %1414 = vmatprep.subr.bf16.mxu0 0
      %1415 = vmatpush2.bf16.msra.mxu0 0
      %1416 = vmatprep.subr.bf16.mxu0 0
      %1417 = vmatpush2.bf16.msra.mxu0 0
      %1418 = vmatprep.subr.bf16.mxu0 0
      %1419 = vmatpush2.bf16.msra.mxu0 0
      %1420 = vmatprep.subr.bf16.mxu0 0
      %1421 = vmatpush2.bf16.msra.mxu0 0
      %1422 = vmatprep.subr.bf16.mxu0 0
      %1423 = vmatpush2.bf16.msra.mxu0 0
      %1424 = vmatprep.subr.bf16.mxu0 0
      %1425 = vmatpush2.bf16.msra.mxu0 0
      %1426 = vmatprep.subr.bf16.mxu0 0
      %1427 = vmatpush2.bf16.msra.mxu0 0
      %1428 = vmatprep.subr.bf16.mxu0 0
      %1429 = vmatpush2.bf16.msra.mxu0 0
      %1430 = vmatprep.mubr.bf16.mxu0 0
      %1431 = vmatmul.mubr.bf16.gmra.mxu0 %v1397
      %v1432 = vpop.f32.mrf.mxu0
      %v1433 = vadd.f32 0.0, %v1432
      %v1434 = vpop.f32.mrf.mxu0
      %v1435 = vadd.f32 0.0, %v1434
      %v1436 = vpop.f32.mrf.mxu0
      %v1437 = vpop.f32.mrf.mxu0
      %1438 = vdwg.mxu0
      %1439 = vmatprep.subr.bf16.mxu0 %v532
      %1440 = vmatpush1.bf16.msra.mxu0 %v531
      %1441 = vmatprep.subr.bf16.mxu0 %v528
      %1442 = vmatpush1.bf16.msra.mxu0 %v527
      %1443 = vmatprep.subr.bf16.mxu0 %v524
      %1444 = vmatpush1.bf16.msra.mxu0 %v523
      %1445 = vmatprep.subr.bf16.mxu0 %v520
      %1446 = vmatpush1.bf16.msra.mxu0 %v519
      %1447 = vmatprep.subr.bf16.mxu0 %v516
      %1448 = vmatpush1.bf16.msra.mxu0 %v515
      %1449 = vmatprep.subr.bf16.mxu0 %v512
      %1450 = vmatpush1.bf16.msra.mxu0 %v511
      %1451 = vmatprep.subr.bf16.mxu0 %v508
      %1452 = vmatpush1.bf16.msra.mxu0 %v507
      %1453 = vmatprep.subr.bf16.mxu0 %v504
      %1454 = vmatpush1.bf16.msra.mxu0 %v503
      %1455 = vmatprep.subr.bf16.mxu0 0
      %1456 = vmatpush2.bf16.msra.mxu0 0
      %1457 = vmatprep.subr.bf16.mxu0 0
      %1458 = vmatpush2.bf16.msra.mxu0 0
      %1459 = vmatprep.subr.bf16.mxu0 0
      %1460 = vmatpush2.bf16.msra.mxu0 0
      %1461 = vmatprep.subr.bf16.mxu0 0
      %1462 = vmatpush2.bf16.msra.mxu0 0
      %1463 = vmatprep.subr.bf16.mxu0 0
      %1464 = vmatpush2.bf16.msra.mxu0 0
      %1465 = vmatprep.subr.bf16.mxu0 0
      %1466 = vmatpush2.bf16.msra.mxu0 0
      %1467 = vmatprep.subr.bf16.mxu0 0
      %1468 = vmatpush2.bf16.msra.mxu0 0
      %1469 = vmatprep.subr.bf16.mxu0 0
      %1470 = vmatpush2.bf16.msra.mxu0 0
      %1471 = vmatprep.mubr.bf16.mxu0 0
      %1472 = vmatmul.mubr.bf16.gmra.mxu0 %v1397
      %v1473 = vpop.f32.mrf.mxu0
      %v1474 = vadd.f32 0.0, %v1473
      %v1475 = vpop.f32.mrf.mxu0
      %v1476 = vadd.f32 0.0, %v1475
      %v1477 = vpop.f32.mrf.mxu0
      %v1478 = vpop.f32.mrf.mxu0
      %1479 = vdwg.mxu0
      %v1480 = vadd.f32 %v1393, %v1433
      %v1481 = vadd.f32 %v1394, %v1435
      %v1482 = vadd.f32 %v1395, %v1474
      %v1483 = vadd.f32 %v1396, %v1476
      %v1484 = vxor.u32 %v1480, 2147483648
      %v1485 = vmul.f32 %v1484, 1.442695
      %v1486 = vpow.pop %v1485
      %v1487 = vadd.f32 %v1486, 1.0
      %v1488 = vrcp.pop %v1487
      %v1489 = vmul.f32 1.0, %v1488
      %v1490 = vxor.u32 %v1481, 2147483648
      %v1491 = vmul.f32 %v1490, 1.442695
      %v1492 = vpow.pop %v1491
      %v1493 = vadd.f32 %v1492, 1.0
      %v1494 = vrcp.pop %v1493
      %v1495 = vmul.f32 1.0, %v1494
      %v1496 = vtanh.pop %v1482
      %v1497 = vxor.u32 %v1483, 2147483648
      %v1498 = vmul.f32 %v1497, 1.442695
      %v1499 = vpow.pop %v1498
      %v1500 = vadd.f32 %v1499, 1.0
      %v1501 = vrcp.pop %v1500
      %v1502 = vmul.f32 1.0, %v1501
      %v1503 = vmul.f32 %v1495, %v1389
      %v1504 = vmul.f32 %v1489, %v1496
      %v1505 = vadd.f32 %v1503, %v1504
      %v1506 = vtanh.pop %v1505
      %v1507 = vmul.f32 %v1502, %v1506
      %vm1508 = vcmp.gt.s32.totalorder %v394, 6
      %v1509 = vsel %vm1508, 1, 0
      %v1510 = vcvt.s32.f32 %v1509
      %1512 = vset.pattern.permute.xlu0 0
      %1513 = vperm.xlu0 %1512, %v1510
      %v1514 = vpop.permute.xlu0 %1513
      %v1516 = vsub.f32 1.0, %v1514
      %v1517 = vmul.f32 %v1514, %v1505
      %v1518 = vmul.f32 %v1516, %v1389
      %v1519 = vadd.f32 %v1517, %v1518
      %1520 = vst [vmem:[#allocation3] sm:$0xff] %v1519
      %v1521 = vmul.f32 %v1514, %v1507
      %v1522 = vmul.f32 %v1516, %v1388
      %v1523 = vadd.f32 %v1521, %v1522
      %1524 = vst [vmem:[#allocation2] sm:$0xff] %v1523
      %s1525 = scalar_lea.vmem [#allocation13], 48
      %1526 = vst [vmem:[%s1525] sm:$0xff] %v1521
      %v1527 = vld [vmem:[#allocation2] sm:$0xff]
      %v1528 = vld [vmem:[#allocation3] sm:$0xff]
      %s1529 = smul.u32 7, 4
      %s1530 = smul.addr %s1529, 8
      %s1531 = scalar_lea.vmem [#allocation4], %s1530
      %v1532 = vld [vmem:[%s1531] sm:$0xff]
      %v1533 = vld [vmem:[%s1531 + $0x8] sm:$0xff]
      %v1534 = vld [vmem:[%s1531 + $0x10] sm:$0xff]
      %v1535 = vld [vmem:[%s1531 + $0x18] sm:$0xff]
      %v1536 = vpack.c.bf16 %v1527, %v1527
      %1537 = vmatprep.subr.bf16.mxu0 %v530
      %1538 = vmatpush1.bf16.msra.mxu0 %v529
      %1539 = vmatprep.subr.bf16.mxu0 %v526
      %1540 = vmatpush1.bf16.msra.mxu0 %v525
      %1541 = vmatprep.subr.bf16.mxu0 %v522
      %1542 = vmatpush1.bf16.msra.mxu0 %v521
      %1543 = vmatprep.subr.bf16.mxu0 %v518
      %1544 = vmatpush1.bf16.msra.mxu0 %v517
      %1545 = vmatprep.subr.bf16.mxu0 %v514
      %1546 = vmatpush1.bf16.msra.mxu0 %v513
      %1547 = vmatprep.subr.bf16.mxu0 %v510
      %1548 = vmatpush1.bf16.msra.mxu0 %v509
      %1549 = vmatprep.subr.bf16.mxu0 %v506
      %1550 = vmatpush1.bf16.msra.mxu0 %v505
      %1551 = vmatprep.subr.bf16.mxu0 %v502
      %1552 = vmatpush1.bf16.msra.mxu0 %v501
      %1553 = vmatprep.subr.bf16.mxu0 0
      %1554 = vmatpush2.bf16.msra.mxu0 0
      %1555 = vmatprep.subr.bf16.mxu0 0
      %1556 = vmatpush2.bf16.msra.mxu0 0
      %1557 = vmatprep.subr.bf16.mxu0 0
      %1558 = vmatpush2.bf16.msra.mxu0 0
      %1559 = vmatprep.subr.bf16.mxu0 0
      %1560 = vmatpush2.bf16.msra.mxu0 0
      %1561 = vmatprep.subr.bf16.mxu0 0
      %1562 = vmatpush2.bf16.msra.mxu0 0
      %1563 = vmatprep.subr.bf16.mxu0 0
      %1564 = vmatpush2.bf16.msra.mxu0 0
      %1565 = vmatprep.subr.bf16.mxu0 0
      %1566 = vmatpush2.bf16.msra.mxu0 0
      %1567 = vmatprep.subr.bf16.mxu0 0
      %1568 = vmatpush2.bf16.msra.mxu0 0
      %1569 = vmatprep.mubr.bf16.mxu0 0
      %1570 = vmatmul.mubr.bf16.gmra.mxu0 %v1536
      %v1571 = vpop.f32.mrf.mxu0
      %v1572 = vadd.f32 0.0, %v1571
      %v1573 = vpop.f32.mrf.mxu0
      %v1574 = vadd.f32 0.0, %v1573
      %v1575 = vpop.f32.mrf.mxu0
      %v1576 = vpop.f32.mrf.mxu0
      %1577 = vdwg.mxu0
      %1578 = vmatprep.subr.bf16.mxu0 %v532
      %1579 = vmatpush1.bf16.msra.mxu0 %v531
      %1580 = vmatprep.subr.bf16.mxu0 %v528
      %1581 = vmatpush1.bf16.msra.mxu0 %v527
      %1582 = vmatprep.subr.bf16.mxu0 %v524
      %1583 = vmatpush1.bf16.msra.mxu0 %v523
      %1584 = vmatprep.subr.bf16.mxu0 %v520
      %1585 = vmatpush1.bf16.msra.mxu0 %v519
      %1586 = vmatprep.subr.bf16.mxu0 %v516
      %1587 = vmatpush1.bf16.msra.mxu0 %v515
      %1588 = vmatprep.subr.bf16.mxu0 %v512
      %1589 = vmatpush1.bf16.msra.mxu0 %v511
      %1590 = vmatprep.subr.bf16.mxu0 %v508
      %1591 = vmatpush1.bf16.msra.mxu0 %v507
      %1592 = vmatprep.subr.bf16.mxu0 %v504
      %1593 = vmatpush1.bf16.msra.mxu0 %v503
      %1594 = vmatprep.subr.bf16.mxu0 0
      %1595 = vmatpush2.bf16.msra.mxu0 0
      %1596 = vmatprep.subr.bf16.mxu0 0
      %1597 = vmatpush2.bf16.msra.mxu0 0
      %1598 = vmatprep.subr.bf16.mxu0 0
      %1599 = vmatpush2.bf16.msra.mxu0 0
      %1600 = vmatprep.subr.bf16.mxu0 0
      %1601 = vmatpush2.bf16.msra.mxu0 0
      %1602 = vmatprep.subr.bf16.mxu0 0
      %1603 = vmatpush2.bf16.msra.mxu0 0
      %1604 = vmatprep.subr.bf16.mxu0 0
      %1605 = vmatpush2.bf16.msra.mxu0 0
      %1606 = vmatprep.subr.bf16.mxu0 0
      %1607 = vmatpush2.bf16.msra.mxu0 0
      %1608 = vmatprep.subr.bf16.mxu0 0
      %1609 = vmatpush2.bf16.msra.mxu0 0
      %1610 = vmatprep.mubr.bf16.mxu0 0
      %1611 = vmatmul.mubr.bf16.gmra.mxu0 %v1536
      %v1612 = vpop.f32.mrf.mxu0
      %v1613 = vadd.f32 0.0, %v1612
      %v1614 = vpop.f32.mrf.mxu0
      %v1615 = vadd.f32 0.0, %v1614
      %v1616 = vpop.f32.mrf.mxu0
      %v1617 = vpop.f32.mrf.mxu0
      %1618 = vdwg.mxu0
      %v1619 = vadd.f32 %v1532, %v1572
      %v1620 = vadd.f32 %v1533, %v1574
      %v1621 = vadd.f32 %v1534, %v1613
      %v1622 = vadd.f32 %v1535, %v1615
      %v1623 = vxor.u32 %v1619, 2147483648
      %v1624 = vmul.f32 %v1623, 1.442695
      %v1625 = vpow.pop %v1624
      %v1626 = vadd.f32 %v1625, 1.0
      %v1627 = vrcp.pop %v1626
      %v1628 = vmul.f32 1.0, %v1627
      %v1629 = vxor.u32 %v1620, 2147483648
      %v1630 = vmul.f32 %v1629, 1.442695
      %v1631 = vpow.pop %v1630
      %v1632 = vadd.f32 %v1631, 1.0
      %v1633 = vrcp.pop %v1632
      %v1634 = vmul.f32 1.0, %v1633
      %v1635 = vtanh.pop %v1621
      %v1636 = vxor.u32 %v1622, 2147483648
      %v1637 = vmul.f32 %v1636, 1.442695
      %v1638 = vpow.pop %v1637
      %v1639 = vadd.f32 %v1638, 1.0
      %v1640 = vrcp.pop %v1639
      %v1641 = vmul.f32 1.0, %v1640
      %v1642 = vmul.f32 %v1634, %v1528
      %v1643 = vmul.f32 %v1628, %v1635
      %v1644 = vadd.f32 %v1642, %v1643
      %v1645 = vtanh.pop %v1644
      %v1646 = vmul.f32 %v1641, %v1645
      %vm1647 = vcmp.gt.s32.totalorder %v394, 7
      %v1648 = vsel %vm1647, 1, 0
      %v1649 = vcvt.s32.f32 %v1648
      %1651 = vset.pattern.permute.xlu0 0
      %1652 = vperm.xlu0 %1651, %v1649
      %v1653 = vpop.permute.xlu0 %1652
      %v1655 = vsub.f32 1.0, %v1653
      %v1656 = vmul.f32 %v1653, %v1644
      %v1657 = vmul.f32 %v1655, %v1528
      %v1658 = vadd.f32 %v1656, %v1657
      %1659 = vst [vmem:[#allocation3] sm:$0xff] %v1658
      %v1660 = vmul.f32 %v1653, %v1646
      %v1661 = vmul.f32 %v1655, %v1527
      %v1662 = vadd.f32 %v1660, %v1661
      %1663 = vst [vmem:[#allocation2] sm:$0xff] %v1662
      %s1664 = scalar_lea.vmem [#allocation13], 56
      %1665 = vst [vmem:[%s1664] sm:$0xff] %v1660
    $region45: #{tpu_custom_call.1} parent=1 // pred_fallthru
      _
    // Predicated region
    $region46: #{tpu_custom_call.1} parent=1 // pred_check
      %p1666 = pneg %p68
    $region47: #{tpu_custom_call.1} parent=1 // pred_check_branch
      %1668 = sbr.rel (%p1666) target = $region49
    $region48: #{tpu_custom_call.1} parent=1 // pred_region
      %v1669 = vld [vmem:[#allocation3] sm:$0xff]
      %1670 = vst [vmem:[#allocation14] sm:$0xff] %v1669
    $region49: #{tpu_custom_call.1} parent=1 // pred_fallthru
      _
    // Predicated region
    $region50: #{tpu_custom_call.1} parent=1 // pred_check
      _
    $region51: #{tpu_custom_call.1} parent=1 // pred_check_branch
      %1672 = sbr.rel (0) target = $region53
    $region52: #{tpu_custom_call.1} parent=1 // pred_region
      %s1674 = ssub.s32 1024, 1024
      %1675 = vsyncadd [#allocation9], %s1674
      %s1676 = sshll.u32 [#allocation13], 4
      %s1677 = int_to_ptr.vmem [resolvable:$true] %s1676
      %1682 = dma.vmem_to_hbm [thread:$0]  %s1677, 1024, %s6, [#allocation9], 128, 128, 8
    $region53: #{tpu_custom_call.1} parent=1 // pred_fallthru
      _
    // Predicated region
    $region54: #{tpu_custom_call.1} parent=1 // pred_check
      _
    $region55: #{tpu_custom_call.1} parent=1 // pred_check_branch
      %1684 = sbr.rel (0) target = $region57
    $region56: #{tpu_custom_call.1} parent=1 // pred_region
      %s1686 = ssub.s32 128, 128
      %1687 = vsyncadd [#allocation15], %s1686
      %s1689 = sshll.u32 [#allocation14], 4
      %s1690 = int_to_ptr.vmem [resolvable:$true] %s1689
      %1692 = dma.vmem_to_hbm [thread:$0]  %s1690, 128, %s7, [#allocation15]
    $region57: #{tpu_custom_call.1} parent=1 // pred_fallthru
      _
    // Predicated region
    $region58: #{tpu_custom_call.1} parent=1 // pred_check
      _
    $region59: #{tpu_custom_call.1} parent=1 // pred_check_branch
      %1694 = sbr.rel (0) target = $region61
    $region60: #{tpu_custom_call.1} parent=1 // pred_region
      %1695 = dma.done [#allocation9], 1024
    $region61: #{tpu_custom_call.1} parent=1 // pred_fallthru
      _
    // Predicated region
    $region62: #{tpu_custom_call.1} parent=1 // pred_check
      _
    $region63: #{tpu_custom_call.1} parent=1 // pred_check_branch
      %1697 = sbr.rel (0) target = $region65
    $region64: #{tpu_custom_call.1} parent=1 // pred_region
      %1698 = dma.done [#allocation15], 128
    $region65: #{tpu_custom_call.1} parent=1 // pred_fallthru
      _
    %1699 = vsyncpa [#allocation8], 1
    %1700 = vsyncpa [#allocation11], 1
    %1701 = vsyncpa [#allocation9], 1
    %1702 = vsyncpa [#allocation15], 1

</llo_original>
